<compile_context>
chip_gen: v6e
topology: v6e:2x2x1
jax: 0.10.0
libtpu: 0.0.40
codegen_flags: <defaults>
</compile_context>

<pallas_src>
import jax
import jax.numpy as jnp
from jax.experimental import pallas as pl
from jax.experimental.pallas import tpu as pltpu


C1, C2 = 5, 10   # conv1 / conv2 output channels


# ----------------------------------------------------------------------------- kernel
def dqn_kernel(x_ref, w1_ref, b1_ref, w2_ref, b2_ref, w3_ref, b3_ref, o_ref):
    """x_ref / o_ref: (bt, W) f32 VMEM tiles, length axis on lanes (possibly with
    several sequences packed back-to-back per row).
    w1_ref (10,), b1_ref (5,), w2_ref (100,), b2_ref (10,), w3_ref (20,), b3_ref (1,):
    flat f32 SMEM buffers in PyTorch (Cout, Cin, K) row-major order."""
    x = x_ref[...]
    W = x.shape[-1]

    def nxt(t):
        # t_next[:, j] == t[:, j + 1]  (circular).  Positive shift W-1 is the
        # same rotation as shift -1; wrapped tail lanes are garbage the wrapper
        # trims (they fall in each sequence's 3 discarded tail positions).
        return pltpu.roll(t, shift=W - 1, axis=1)

    # ---- conv1 (1 -> 5, k=2) + ReLU, full width -----------------------------
    x1 = nxt(x)
    h1 = [
        jnp.maximum(w1_ref[2 * c] * x + w1_ref[2 * c + 1] * x1 + b1_ref[c], 0.0)
        for c in range(C1)
    ]

    # ---- conv2 (5 -> 10, k=2) + ReLU, fused with conv3 (10 -> 1, k=2) -------
    # k=1 taps are deferred: sum_i w*h1[i][j+1] == roll(sum_i w*h1[i])[j], so
    # each conv2 channel needs exactly ONE roll; conv3's k=1 tap likewise uses
    # a single roll of an accumulator at the end.
    acc0 = None   # sum_o w3[o,0] * h2[o]
    acc1 = None   # sum_o w3[o,1] * h2[o]   (rolled once below)
    for o in range(C2):
        t0 = w2_ref[10 * o] * h1[0]
        t1 = w2_ref[10 * o + 1] * h1[0]
        for i in range(1, C1):
            t0 = t0 + w2_ref[10 * o + 2 * i] * h1[i]
            t1 = t1 + w2_ref[10 * o + 2 * i + 1] * h1[i]
        h2o = jnp.maximum(t0 + nxt(t1) + b2_ref[o], 0.0)
        c0 = w3_ref[2 * o] * h2o
        c1 = w3_ref[2 * o + 1] * h2o
        acc0 = c0 if acc0 is None else acc0 + c0
        acc1 = c1 if acc1 is None else acc1 + c1

    y = acc0 + nxt(acc1) + b3_ref[0]
    # Full-width dense store (no masked tail); per-sequence garbage tail and
    # padded rows are trimmed in the wrapper.  torch.round == jnp.round (half-to-even).
    o_ref[...] = jnp.round(y)


# ----------------------------------------------------------------------------- wrapper
def _round_up(a, m):
    return (a + m - 1) // m * m


def _choose_packing(L):
    """How many sequences to pack per lane row so the row width W = n*L keeps the
    128-lane axis as dense as possible (W capped at ~1024 lanes)."""
    best_n, best_u = 1, -1.0
    for n in range(1, max(1, 1024 // L) + 1):
        w = n * L
        u = w / _round_up(w, 128)          # lane utilization
        if u > best_u + 1e-9:
            best_n, best_u = n, u
    return best_n, best_n * L


_LIVE_SLABS = 20           # ~11 live full-width f32 temps + 2x double-buffered I/O + margin
_VMEM_BUDGET = 10 << 20    # bytes of live working set; safe even on v7x (64 MiB / TC)


def _pick_row_tile(rows, W):
    """Largest multiple-of-8 row tile whose working set fits the VMEM budget,
    then spread rows evenly over the grid (batch gets padded up to bt*steps)."""
    cap = _VMEM_BUDGET // (_LIVE_SLABS * W * 4)
    cap = max(8, min(1024, (cap // 8) * 8))
    if rows <= cap:
        return _round_up(rows, 8), 1
    steps = -(-rows // cap)
    bt = _round_up(-(-rows // steps), 8)
    return bt, steps


def dqn_forward(x_ncl, params):
    """x_ncl: (B, 1, L) float32 (PyTorch NCL layout).  Returns (B, 1, L-3)."""
    (w1, b1), (w2, b2), (w3, b3) = params
    B, cin, L = x_ncl.shape
    assert cin == 1 and L >= 4
    Lout = L - 3

    n_pack, W = _choose_packing(L)
    rows = -(-B // n_pack)
    bt, steps = _pick_row_tile(rows, W)
    R_pad = bt * steps
    B_pad = R_pad * n_pack

    x_bl = x_ncl.reshape(B, L).astype(jnp.float32)
    if B_pad != B:
        x_bl = jnp.pad(x_bl, ((0, B_pad - B), (0, 0)))
    x_rw = x_bl.reshape(R_pad, W)          # n_pack sequences packed per lane row

    # Flat 1-D SMEM weight/bias buffers (PyTorch (Cout, Cin, K) row-major).
    w1f = jnp.asarray(w1, jnp.float32).reshape(-1)   # (10,)
    b1f = jnp.asarray(b1, jnp.float32).reshape(-1)   # (5,)
    w2f = jnp.asarray(w2, jnp.float32).reshape(-1)   # (100,)
    b2f = jnp.asarray(b2, jnp.float32).reshape(-1)   # (10,)
    w3f = jnp.asarray(w3, jnp.float32).reshape(-1)   # (20,)
    b3f = jnp.asarray(b3, jnp.float32).reshape(-1)   # (1,)

    smem = pl.BlockSpec(memory_space=pltpu.MemorySpace.SMEM)
    out_rw = pl.pallas_call(
        dqn_kernel,
        out_shape=jax.ShapeDtypeStruct((R_pad, W), jnp.float32),
        grid=(steps,),
        in_specs=[
            pl.BlockSpec((bt, W), lambda r: (r, 0)),   # lane-dense input tile
            smem, smem, smem, smem, smem, smem,        # tiny flat weights/biases
        ],
        out_specs=pl.BlockSpec((bt, W), lambda r: (r, 0)),  # full-width dense store
        compiler_params=pltpu.CompilerParams(
            dimension_semantics=("parallel",),
            vmem_limit_bytes=32 * 1024 * 1024,
        ),
    )(x_rw, w1f, b1f, w2f, b2f, w3f, b3f)

    out = out_rw.reshape(B_pad, L)[:B, :Lout]   # drop padded rows + garbage tails
    return out.reshape(B, 1, Lout)


# ----------------------------------------------------------------------------- reference / init
def init_params(key):
    """Deterministic init mimicking PyTorch Conv1d default (uniform +/- 1/sqrt(fan_in*k))."""
    def conv_init(k, cout, cin, ksize):
        k_w, k_b = jax.random.split(k)
        bound = 1.0 / jnp.sqrt(cin * ksize)
        w = jax.random.uniform(k_w, (cout, cin, ksize), jnp.float32, -bound, bound)
        b = jax.random.uniform(k_b, (cout,), jnp.float32, -bound, bound)
        return w, b

    k1, k2, k3 = jax.random.split(key, 3)
    return (conv_init(k1, C1, 1, 2),
            conv_init(k2, C2, C1, 2),
            conv_init(k3, 1, C2, 2))


def dqn_reference(x_ncl, params):
    """Pure-JAX reference.  Returns (rounded_output, pre_round_output)."""
    (w1, b1), (w2, b2), (w3, b3) = params

    def conv(x, w, b):  # x: (B, Cin, L), w: (Cout, Cin, 2)
        lout = x.shape[-1] - 1
        return (jnp.einsum("bcl,oc->bol", x[:, :, :lout], w[:, :, 0])
                + jnp.einsum("bcl,oc->bol", x[:, :, 1:lout + 1], w[:, :, 1])
                + b[None, :, None])

    h = jax.nn.relu(conv(x_ncl, w1, b1))
    h = jax.nn.relu(conv(h, w2, b2))
    y = conv(h, w3, b3)
    return jnp.round(y), y


def _check(out, ref_round, ref_pre, name):
    assert out.shape == ref_round.shape, (name, out.shape, ref_round.shape)
    # The kernel output must be a valid rounding of (something within float
    # accumulation error of) the reference pre-round value; rounded results
    # match exactly except possibly at values sitting on a .5 boundary.
    max_dev = float(jnp.max(jnp.abs(out - ref_pre)))
    exact = float(jnp.mean((out == ref_round).astype(jnp.float32)))
    assert max_dev <= 0.5 + 1e-3, (name, max_dev)
    assert exact > 0.999, (name, exact)


# ----------------------------------------------------------------------------- main
if __name__ == "__main__":
    key = jax.random.PRNGKey(0)
    k_params, k1, k2, k3 = jax.random.split(key, 4)
    params = init_params(k_params)

    # 1) Small cartpole-like shape: L=16 -> 8 sequences packed per 128-lane row.
    x = jax.random.normal(k1, (2, 1, 16), jnp.float32)
    out = jax.block_until_ready(dqn_forward(x, params))
    ref_r, ref_p = dqn_reference(x, params)
    _check(out, ref_r, ref_p, "small")

    # 2) Lane-wide L (no packing), single-step grid.
    x = jax.random.normal(k2, (256, 1, 128), jnp.float32)
    out = jax.block_until_ready(dqn_forward(x, params))
    ref_r, ref_p = dqn_reference(x, params)
    _check(out, ref_r, ref_p, "wide")

    # 3) Larger, non-multiple-of-8 batch: exercises batch padding plus a
    #    multi-step pipelined "parallel" grid.
    x = jax.random.normal(k3, (2053, 1, 128), jnp.float32)
    out = jax.block_until_ready(dqn_forward(x, params))
    ref_r, ref_p = dqn_reference(x, params)
    _check(out, ref_r, ref_p, "big")

    print("KERNEL_OK")
</pallas_src>

<mosaic_0001>
module attributes {stable_mosaic.version = 11 : i64} {
  func.func @dqn_kernel(%arg0: i32, %arg1: memref<8x128xf32, #tpu.memory_space<vmem>>, %arg2: memref<10xf32, #tpu.memory_space<smem>>, %arg3: memref<5xf32, #tpu.memory_space<smem>>, %arg4: memref<100xf32, #tpu.memory_space<smem>>, %arg5: memref<10xf32, #tpu.memory_space<smem>>, %arg6: memref<20xf32, #tpu.memory_space<smem>>, %arg7: memref<1xf32, #tpu.memory_space<smem>>, %arg8: memref<8x128xf32, #tpu.memory_space<vmem>>) attributes {dimension_semantics = [#tpu.dimension_semantics<parallel>], iteration_bounds = array<i64: 1>, scalar_prefetch = 0 : i64, scratch_operands = 0 : i64, tpu.core_type = #tpu.core_type<tc>, window_params = [{transform_indices = @transform_0, window_bounds = array<i64: 8, 128>}, {transform_indices = @transform_1, window_bounds = array<i64: 10>}, {transform_indices = @transform_2, window_bounds = array<i64: 5>}, {transform_indices = @transform_3, window_bounds = array<i64: 100>}, {transform_indices = @transform_4, window_bounds = array<i64: 10>}, {transform_indices = @transform_5, window_bounds = array<i64: 20>}, {transform_indices = @transform_6, window_bounds = array<i64: 1>}, {transform_indices = @transform_7, window_bounds = array<i64: 8, 128>}]} {
    %c0 = arith.constant 0 : index
    %c0_0 = arith.constant 0 : index
    %0 = vector.load %arg1[%c0, %c0_0] : memref<8x128xf32, #tpu.memory_space<vmem>>, vector<8x128xf32>
    %c127_i32 = arith.constant 127 : i32
    %1 = tpu.dynamic_rotate %0 by %c127_i32 dim 1 : vector<8x128xf32>, i32 -> vector<8x128xf32>
    %c0_1 = arith.constant 0 : index
    %2 = memref.load %arg2[%c0_1] : memref<10xf32, #tpu.memory_space<smem>>
    %3 = vector.broadcast %2 : f32 to vector<8x128xf32>
    %4 = arith.mulf %3, %0 : vector<8x128xf32>
    %c1 = arith.constant 1 : index
    %5 = memref.load %arg2[%c1] : memref<10xf32, #tpu.memory_space<smem>>
    %6 = vector.broadcast %5 : f32 to vector<8x128xf32>
    %7 = arith.mulf %6, %1 : vector<8x128xf32>
    %8 = arith.addf %4, %7 : vector<8x128xf32>
    %c0_2 = arith.constant 0 : index
    %9 = memref.load %arg3[%c0_2] : memref<5xf32, #tpu.memory_space<smem>>
    %10 = vector.broadcast %9 : f32 to vector<8x128xf32>
    %11 = arith.addf %8, %10 : vector<8x128xf32>
    %cst = arith.constant 0.000000e+00 : f32
    %12 = vector.broadcast %cst : f32 to vector<8x128xf32>
    %13 = arith.maximumf %11, %12 : vector<8x128xf32>
    %c2 = arith.constant 2 : index
    %14 = memref.load %arg2[%c2] : memref<10xf32, #tpu.memory_space<smem>>
    %15 = vector.broadcast %14 : f32 to vector<8x128xf32>
    %16 = arith.mulf %15, %0 : vector<8x128xf32>
    %c3 = arith.constant 3 : index
    %17 = memref.load %arg2[%c3] : memref<10xf32, #tpu.memory_space<smem>>
    %18 = vector.broadcast %17 : f32 to vector<8x128xf32>
    %19 = arith.mulf %18, %1 : vector<8x128xf32>
    %20 = arith.addf %16, %19 : vector<8x128xf32>
    %c1_3 = arith.constant 1 : index
    %21 = memref.load %arg3[%c1_3] : memref<5xf32, #tpu.memory_space<smem>>
    %22 = vector.broadcast %21 : f32 to vector<8x128xf32>
    %23 = arith.addf %20, %22 : vector<8x128xf32>
    %cst_4 = arith.constant 0.000000e+00 : f32
    %24 = vector.broadcast %cst_4 : f32 to vector<8x128xf32>
    %25 = arith.maximumf %23, %24 : vector<8x128xf32>
    %c4 = arith.constant 4 : index
    %26 = memref.load %arg2[%c4] : memref<10xf32, #tpu.memory_space<smem>>
    %27 = vector.broadcast %26 : f32 to vector<8x128xf32>
    %28 = arith.mulf %27, %0 : vector<8x128xf32>
    %c5 = arith.constant 5 : index
    %29 = memref.load %arg2[%c5] : memref<10xf32, #tpu.memory_space<smem>>
    %30 = vector.broadcast %29 : f32 to vector<8x128xf32>
    %31 = arith.mulf %30, %1 : vector<8x128xf32>
    %32 = arith.addf %28, %31 : vector<8x128xf32>
    %c2_5 = arith.constant 2 : index
    %33 = memref.load %arg3[%c2_5] : memref<5xf32, #tpu.memory_space<smem>>
    %34 = vector.broadcast %33 : f32 to vector<8x128xf32>
    %35 = arith.addf %32, %34 : vector<8x128xf32>
    %cst_6 = arith.constant 0.000000e+00 : f32
    %36 = vector.broadcast %cst_6 : f32 to vector<8x128xf32>
    %37 = arith.maximumf %35, %36 : vector<8x128xf32>
    %c6 = arith.constant 6 : index
    %38 = memref.load %arg2[%c6] : memref<10xf32, #tpu.memory_space<smem>>
    %39 = vector.broadcast %38 : f32 to vector<8x128xf32>
    %40 = arith.mulf %39, %0 : vector<8x128xf32>
    %c7 = arith.constant 7 : index
    %41 = memref.load %arg2[%c7] : memref<10xf32, #tpu.memory_space<smem>>
    %42 = vector.broadcast %41 : f32 to vector<8x128xf32>
    %43 = arith.mulf %42, %1 : vector<8x128xf32>
    %44 = arith.addf %40, %43 : vector<8x128xf32>
    %c3_7 = arith.constant 3 : index
    %45 = memref.load %arg3[%c3_7] : memref<5xf32, #tpu.memory_space<smem>>
    %46 = vector.broadcast %45 : f32 to vector<8x128xf32>
    %47 = arith.addf %44, %46 : vector<8x128xf32>
    %cst_8 = arith.constant 0.000000e+00 : f32
    %48 = vector.broadcast %cst_8 : f32 to vector<8x128xf32>
    %49 = arith.maximumf %47, %48 : vector<8x128xf32>
    %c8 = arith.constant 8 : index
    %50 = memref.load %arg2[%c8] : memref<10xf32, #tpu.memory_space<smem>>
    %51 = vector.broadcast %50 : f32 to vector<8x128xf32>
    %52 = arith.mulf %51, %0 : vector<8x128xf32>
    %c9 = arith.constant 9 : index
    %53 = memref.load %arg2[%c9] : memref<10xf32, #tpu.memory_space<smem>>
    %54 = vector.broadcast %53 : f32 to vector<8x128xf32>
    %55 = arith.mulf %54, %1 : vector<8x128xf32>
    %56 = arith.addf %52, %55 : vector<8x128xf32>
    %c4_9 = arith.constant 4 : index
    %57 = memref.load %arg3[%c4_9] : memref<5xf32, #tpu.memory_space<smem>>
    %58 = vector.broadcast %57 : f32 to vector<8x128xf32>
    %59 = arith.addf %56, %58 : vector<8x128xf32>
    %cst_10 = arith.constant 0.000000e+00 : f32
    %60 = vector.broadcast %cst_10 : f32 to vector<8x128xf32>
    %61 = arith.maximumf %59, %60 : vector<8x128xf32>
    %c0_11 = arith.constant 0 : index
    %62 = memref.load %arg4[%c0_11] : memref<100xf32, #tpu.memory_space<smem>>
    %63 = vector.broadcast %62 : f32 to vector<8x128xf32>
    %64 = arith.mulf %63, %13 : vector<8x128xf32>
    %c1_12 = arith.constant 1 : index
    %65 = memref.load %arg4[%c1_12] : memref<100xf32, #tpu.memory_space<smem>>
    %66 = vector.broadcast %65 : f32 to vector<8x128xf32>
    %67 = arith.mulf %66, %13 : vector<8x128xf32>
    %c2_13 = arith.constant 2 : index
    %68 = memref.load %arg4[%c2_13] : memref<100xf32, #tpu.memory_space<smem>>
    %69 = vector.broadcast %68 : f32 to vector<8x128xf32>
    %70 = arith.mulf %69, %25 : vector<8x128xf32>
    %71 = arith.addf %64, %70 : vector<8x128xf32>
    %c3_14 = arith.constant 3 : index
    %72 = memref.load %arg4[%c3_14] : memref<100xf32, #tpu.memory_space<smem>>
    %73 = vector.broadcast %72 : f32 to vector<8x128xf32>
    %74 = arith.mulf %73, %25 : vector<8x128xf32>
    %75 = arith.addf %67, %74 : vector<8x128xf32>
    %c4_15 = arith.constant 4 : index
    %76 = memref.load %arg4[%c4_15] : memref<100xf32, #tpu.memory_space<smem>>
    %77 = vector.broadcast %76 : f32 to vector<8x128xf32>
    %78 = arith.mulf %77, %37 : vector<8x128xf32>
    %79 = arith.addf %71, %78 : vector<8x128xf32>
    %c5_16 = arith.constant 5 : index
    %80 = memref.load %arg4[%c5_16] : memref<100xf32, #tpu.memory_space<smem>>
    %81 = vector.broadcast %80 : f32 to vector<8x128xf32>
    %82 = arith.mulf %81, %37 : vector<8x128xf32>
    %83 = arith.addf %75, %82 : vector<8x128xf32>
    %c6_17 = arith.constant 6 : index
    %84 = memref.load %arg4[%c6_17] : memref<100xf32, #tpu.memory_space<smem>>
    %85 = vector.broadcast %84 : f32 to vector<8x128xf32>
    %86 = arith.mulf %85, %49 : vector<8x128xf32>
    %87 = arith.addf %79, %86 : vector<8x128xf32>
    %c7_18 = arith.constant 7 : index
    %88 = memref.load %arg4[%c7_18] : memref<100xf32, #tpu.memory_space<smem>>
    %89 = vector.broadcast %88 : f32 to vector<8x128xf32>
    %90 = arith.mulf %89, %49 : vector<8x128xf32>
    %91 = arith.addf %83, %90 : vector<8x128xf32>
    %c8_19 = arith.constant 8 : index
    %92 = memref.load %arg4[%c8_19] : memref<100xf32, #tpu.memory_space<smem>>
    %93 = vector.broadcast %92 : f32 to vector<8x128xf32>
    %94 = arith.mulf %93, %61 : vector<8x128xf32>
    %95 = arith.addf %87, %94 : vector<8x128xf32>
    %c9_20 = arith.constant 9 : index
    %96 = memref.load %arg4[%c9_20] : memref<100xf32, #tpu.memory_space<smem>>
    %97 = vector.broadcast %96 : f32 to vector<8x128xf32>
    %98 = arith.mulf %97, %61 : vector<8x128xf32>
    %99 = arith.addf %91, %98 : vector<8x128xf32>
    %c127_i32_21 = arith.constant 127 : i32
    %100 = tpu.dynamic_rotate %99 by %c127_i32_21 dim 1 : vector<8x128xf32>, i32 -> vector<8x128xf32>
    %101 = arith.addf %95, %100 : vector<8x128xf32>
    %c0_22 = arith.constant 0 : index
    %102 = memref.load %arg5[%c0_22] : memref<10xf32, #tpu.memory_space<smem>>
    %103 = vector.broadcast %102 : f32 to vector<8x128xf32>
    %104 = arith.addf %101, %103 : vector<8x128xf32>
    %cst_23 = arith.constant 0.000000e+00 : f32
    %105 = vector.broadcast %cst_23 : f32 to vector<8x128xf32>
    %106 = arith.maximumf %104, %105 : vector<8x128xf32>
    %c0_24 = arith.constant 0 : index
    %107 = memref.load %arg6[%c0_24] : memref<20xf32, #tpu.memory_space<smem>>
    %108 = vector.broadcast %107 : f32 to vector<8x128xf32>
    %109 = arith.mulf %108, %106 : vector<8x128xf32>
    %c1_25 = arith.constant 1 : index
    %110 = memref.load %arg6[%c1_25] : memref<20xf32, #tpu.memory_space<smem>>
    %111 = vector.broadcast %110 : f32 to vector<8x128xf32>
    %112 = arith.mulf %111, %106 : vector<8x128xf32>
    %c10 = arith.constant 10 : index
    %113 = memref.load %arg4[%c10] : memref<100xf32, #tpu.memory_space<smem>>
    %114 = vector.broadcast %113 : f32 to vector<8x128xf32>
    %115 = arith.mulf %114, %13 : vector<8x128xf32>
    %c11 = arith.constant 11 : index
    %116 = memref.load %arg4[%c11] : memref<100xf32, #tpu.memory_space<smem>>
    %117 = vector.broadcast %116 : f32 to vector<8x128xf32>
    %118 = arith.mulf %117, %13 : vector<8x128xf32>
    %c12 = arith.constant 12 : index
    %119 = memref.load %arg4[%c12] : memref<100xf32, #tpu.memory_space<smem>>
    %120 = vector.broadcast %119 : f32 to vector<8x128xf32>
    %121 = arith.mulf %120, %25 : vector<8x128xf32>
    %122 = arith.addf %115, %121 : vector<8x128xf32>
    %c13 = arith.constant 13 : index
    %123 = memref.load %arg4[%c13] : memref<100xf32, #tpu.memory_space<smem>>
    %124 = vector.broadcast %123 : f32 to vector<8x128xf32>
    %125 = arith.mulf %124, %25 : vector<8x128xf32>
    %126 = arith.addf %118, %125 : vector<8x128xf32>
    %c14 = arith.constant 14 : index
    %127 = memref.load %arg4[%c14] : memref<100xf32, #tpu.memory_space<smem>>
    %128 = vector.broadcast %127 : f32 to vector<8x128xf32>
    %129 = arith.mulf %128, %37 : vector<8x128xf32>
    %130 = arith.addf %122, %129 : vector<8x128xf32>
    %c15 = arith.constant 15 : index
    %131 = memref.load %arg4[%c15] : memref<100xf32, #tpu.memory_space<smem>>
    %132 = vector.broadcast %131 : f32 to vector<8x128xf32>
    %133 = arith.mulf %132, %37 : vector<8x128xf32>
    %134 = arith.addf %126, %133 : vector<8x128xf32>
    %c16 = arith.constant 16 : index
    %135 = memref.load %arg4[%c16] : memref<100xf32, #tpu.memory_space<smem>>
    %136 = vector.broadcast %135 : f32 to vector<8x128xf32>
    %137 = arith.mulf %136, %49 : vector<8x128xf32>
    %138 = arith.addf %130, %137 : vector<8x128xf32>
    %c17 = arith.constant 17 : index
    %139 = memref.load %arg4[%c17] : memref<100xf32, #tpu.memory_space<smem>>
    %140 = vector.broadcast %139 : f32 to vector<8x128xf32>
    %141 = arith.mulf %140, %49 : vector<8x128xf32>
    %142 = arith.addf %134, %141 : vector<8x128xf32>
    %c18 = arith.constant 18 : index
    %143 = memref.load %arg4[%c18] : memref<100xf32, #tpu.memory_space<smem>>
    %144 = vector.broadcast %143 : f32 to vector<8x128xf32>
    %145 = arith.mulf %144, %61 : vector<8x128xf32>
    %146 = arith.addf %138, %145 : vector<8x128xf32>
    %c19 = arith.constant 19 : index
    %147 = memref.load %arg4[%c19] : memref<100xf32, #tpu.memory_space<smem>>
    %148 = vector.broadcast %147 : f32 to vector<8x128xf32>
    %149 = arith.mulf %148, %61 : vector<8x128xf32>
    %150 = arith.addf %142, %149 : vector<8x128xf32>
    %c127_i32_26 = arith.constant 127 : i32
    %151 = tpu.dynamic_rotate %150 by %c127_i32_26 dim 1 : vector<8x128xf32>, i32 -> vector<8x128xf32>
    %152 = arith.addf %146, %151 : vector<8x128xf32>
    %c1_27 = arith.constant 1 : index
    %153 = memref.load %arg5[%c1_27] : memref<10xf32, #tpu.memory_space<smem>>
    %154 = vector.broadcast %153 : f32 to vector<8x128xf32>
    %155 = arith.addf %152, %154 : vector<8x128xf32>
    %cst_28 = arith.constant 0.000000e+00 : f32
    %156 = vector.broadcast %cst_28 : f32 to vector<8x128xf32>
    %157 = arith.maximumf %155, %156 : vector<8x128xf32>
    %c2_29 = arith.constant 2 : index
    %158 = memref.load %arg6[%c2_29] : memref<20xf32, #tpu.memory_space<smem>>
    %159 = vector.broadcast %158 : f32 to vector<8x128xf32>
    %160 = arith.mulf %159, %157 : vector<8x128xf32>
    %c3_30 = arith.constant 3 : index
    %161 = memref.load %arg6[%c3_30] : memref<20xf32, #tpu.memory_space<smem>>
    %162 = vector.broadcast %161 : f32 to vector<8x128xf32>
    %163 = arith.mulf %162, %157 : vector<8x128xf32>
    %164 = arith.addf %109, %160 : vector<8x128xf32>
    %165 = arith.addf %112, %163 : vector<8x128xf32>
    %c20 = arith.constant 20 : index
    %166 = memref.load %arg4[%c20] : memref<100xf32, #tpu.memory_space<smem>>
    %167 = vector.broadcast %166 : f32 to vector<8x128xf32>
    %168 = arith.mulf %167, %13 : vector<8x128xf32>
    %c21 = arith.constant 21 : index
    %169 = memref.load %arg4[%c21] : memref<100xf32, #tpu.memory_space<smem>>
    %170 = vector.broadcast %169 : f32 to vector<8x128xf32>
    %171 = arith.mulf %170, %13 : vector<8x128xf32>
    %c22 = arith.constant 22 : index
    %172 = memref.load %arg4[%c22] : memref<100xf32, #tpu.memory_space<smem>>
    %173 = vector.broadcast %172 : f32 to vector<8x128xf32>
    %174 = arith.mulf %173, %25 : vector<8x128xf32>
    %175 = arith.addf %168, %174 : vector<8x128xf32>
    %c23 = arith.constant 23 : index
    %176 = memref.load %arg4[%c23] : memref<100xf32, #tpu.memory_space<smem>>
    %177 = vector.broadcast %176 : f32 to vector<8x128xf32>
    %178 = arith.mulf %177, %25 : vector<8x128xf32>
    %179 = arith.addf %171, %178 : vector<8x128xf32>
    %c24 = arith.constant 24 : index
    %180 = memref.load %arg4[%c24] : memref<100xf32, #tpu.memory_space<smem>>
    %181 = vector.broadcast %180 : f32 to vector<8x128xf32>
    %182 = arith.mulf %181, %37 : vector<8x128xf32>
    %183 = arith.addf %175, %182 : vector<8x128xf32>
    %c25 = arith.constant 25 : index
    %184 = memref.load %arg4[%c25] : memref<100xf32, #tpu.memory_space<smem>>
    %185 = vector.broadcast %184 : f32 to vector<8x128xf32>
    %186 = arith.mulf %185, %37 : vector<8x128xf32>
    %187 = arith.addf %179, %186 : vector<8x128xf32>
    %c26 = arith.constant 26 : index
    %188 = memref.load %arg4[%c26] : memref<100xf32, #tpu.memory_space<smem>>
    %189 = vector.broadcast %188 : f32 to vector<8x128xf32>
    %190 = arith.mulf %189, %49 : vector<8x128xf32>
    %191 = arith.addf %183, %190 : vector<8x128xf32>
    %c27 = arith.constant 27 : index
    %192 = memref.load %arg4[%c27] : memref<100xf32, #tpu.memory_space<smem>>
    %193 = vector.broadcast %192 : f32 to vector<8x128xf32>
    %194 = arith.mulf %193, %49 : vector<8x128xf32>
    %195 = arith.addf %187, %194 : vector<8x128xf32>
    %c28 = arith.constant 28 : index
    %196 = memref.load %arg4[%c28] : memref<100xf32, #tpu.memory_space<smem>>
    %197 = vector.broadcast %196 : f32 to vector<8x128xf32>
    %198 = arith.mulf %197, %61 : vector<8x128xf32>
    %199 = arith.addf %191, %198 : vector<8x128xf32>
    %c29 = arith.constant 29 : index
    %200 = memref.load %arg4[%c29] : memref<100xf32, #tpu.memory_space<smem>>
    %201 = vector.broadcast %200 : f32 to vector<8x128xf32>
    %202 = arith.mulf %201, %61 : vector<8x128xf32>
    %203 = arith.addf %195, %202 : vector<8x128xf32>
    %c127_i32_31 = arith.constant 127 : i32
    %204 = tpu.dynamic_rotate %203 by %c127_i32_31 dim 1 : vector<8x128xf32>, i32 -> vector<8x128xf32>
    %205 = arith.addf %199, %204 : vector<8x128xf32>
    %c2_32 = arith.constant 2 : index
    %206 = memref.load %arg5[%c2_32] : memref<10xf32, #tpu.memory_space<smem>>
    %207 = vector.broadcast %206 : f32 to vector<8x128xf32>
    %208 = arith.addf %205, %207 : vector<8x128xf32>
    %cst_33 = arith.constant 0.000000e+00 : f32
    %209 = vector.broadcast %cst_33 : f32 to vector<8x128xf32>
    %210 = arith.maximumf %208, %209 : vector<8x128xf32>
    %c4_34 = arith.constant 4 : index
    %211 = memref.load %arg6[%c4_34] : memref<20xf32, #tpu.memory_space<smem>>
    %212 = vector.broadcast %211 : f32 to vector<8x128xf32>
    %213 = arith.mulf %212, %210 : vector<8x128xf32>
    %c5_35 = arith.constant 5 : index
    %214 = memref.load %arg6[%c5_35] : memref<20xf32, #tpu.memory_space<smem>>
    %215 = vector.broadcast %214 : f32 to vector<8x128xf32>
    %216 = arith.mulf %215, %210 : vector<8x128xf32>
    %217 = arith.addf %164, %213 : vector<8x128xf32>
    %218 = arith.addf %165, %216 : vector<8x128xf32>
    %c30 = arith.constant 30 : index
    %219 = memref.load %arg4[%c30] : memref<100xf32, #tpu.memory_space<smem>>
    %220 = vector.broadcast %219 : f32 to vector<8x128xf32>
    %221 = arith.mulf %220, %13 : vector<8x128xf32>
    %c31 = arith.constant 31 : index
    %222 = memref.load %arg4[%c31] : memref<100xf32, #tpu.memory_space<smem>>
    %223 = vector.broadcast %222 : f32 to vector<8x128xf32>
    %224 = arith.mulf %223, %13 : vector<8x128xf32>
    %c32 = arith.constant 32 : index
    %225 = memref.load %arg4[%c32] : memref<100xf32, #tpu.memory_space<smem>>
    %226 = vector.broadcast %225 : f32 to vector<8x128xf32>
    %227 = arith.mulf %226, %25 : vector<8x128xf32>
    %228 = arith.addf %221, %227 : vector<8x128xf32>
    %c33 = arith.constant 33 : index
    %229 = memref.load %arg4[%c33] : memref<100xf32, #tpu.memory_space<smem>>
    %230 = vector.broadcast %229 : f32 to vector<8x128xf32>
    %231 = arith.mulf %230, %25 : vector<8x128xf32>
    %232 = arith.addf %224, %231 : vector<8x128xf32>
    %c34 = arith.constant 34 : index
    %233 = memref.load %arg4[%c34] : memref<100xf32, #tpu.memory_space<smem>>
    %234 = vector.broadcast %233 : f32 to vector<8x128xf32>
    %235 = arith.mulf %234, %37 : vector<8x128xf32>
    %236 = arith.addf %228, %235 : vector<8x128xf32>
    %c35 = arith.constant 35 : index
    %237 = memref.load %arg4[%c35] : memref<100xf32, #tpu.memory_space<smem>>
    %238 = vector.broadcast %237 : f32 to vector<8x128xf32>
    %239 = arith.mulf %238, %37 : vector<8x128xf32>
    %240 = arith.addf %232, %239 : vector<8x128xf32>
    %c36 = arith.constant 36 : index
    %241 = memref.load %arg4[%c36] : memref<100xf32, #tpu.memory_space<smem>>
    %242 = vector.broadcast %241 : f32 to vector<8x128xf32>
    %243 = arith.mulf %242, %49 : vector<8x128xf32>
    %244 = arith.addf %236, %243 : vector<8x128xf32>
    %c37 = arith.constant 37 : index
    %245 = memref.load %arg4[%c37] : memref<100xf32, #tpu.memory_space<smem>>
    %246 = vector.broadcast %245 : f32 to vector<8x128xf32>
    %247 = arith.mulf %246, %49 : vector<8x128xf32>
    %248 = arith.addf %240, %247 : vector<8x128xf32>
    %c38 = arith.constant 38 : index
    %249 = memref.load %arg4[%c38] : memref<100xf32, #tpu.memory_space<smem>>
    %250 = vector.broadcast %249 : f32 to vector<8x128xf32>
    %251 = arith.mulf %250, %61 : vector<8x128xf32>
    %252 = arith.addf %244, %251 : vector<8x128xf32>
    %c39 = arith.constant 39 : index
    %253 = memref.load %arg4[%c39] : memref<100xf32, #tpu.memory_space<smem>>
    %254 = vector.broadcast %253 : f32 to vector<8x128xf32>
    %255 = arith.mulf %254, %61 : vector<8x128xf32>
    %256 = arith.addf %248, %255 : vector<8x128xf32>
    %c127_i32_36 = arith.constant 127 : i32
    %257 = tpu.dynamic_rotate %256 by %c127_i32_36 dim 1 : vector<8x128xf32>, i32 -> vector<8x128xf32>
    %258 = arith.addf %252, %257 : vector<8x128xf32>
    %c3_37 = arith.constant 3 : index
    %259 = memref.load %arg5[%c3_37] : memref<10xf32, #tpu.memory_space<smem>>
    %260 = vector.broadcast %259 : f32 to vector<8x128xf32>
    %261 = arith.addf %258, %260 : vector<8x128xf32>
    %cst_38 = arith.constant 0.000000e+00 : f32
    %262 = vector.broadcast %cst_38 : f32 to vector<8x128xf32>
    %263 = arith.maximumf %261, %262 : vector<8x128xf32>
    %c6_39 = arith.constant 6 : index
    %264 = memref.load %arg6[%c6_39] : memref<20xf32, #tpu.memory_space<smem>>
    %265 = vector.broadcast %264 : f32 to vector<8x128xf32>
    %266 = arith.mulf %265, %263 : vector<8x128xf32>
    %c7_40 = arith.constant 7 : index
    %267 = memref.load %arg6[%c7_40] : memref<20xf32, #tpu.memory_space<smem>>
    %268 = vector.broadcast %267 : f32 to vector<8x128xf32>
    %269 = arith.mulf %268, %263 : vector<8x128xf32>
    %270 = arith.addf %217, %266 : vector<8x128xf32>
    %271 = arith.addf %218, %269 : vector<8x128xf32>
    %c40 = arith.constant 40 : index
    %272 = memref.load %arg4[%c40] : memref<100xf32, #tpu.memory_space<smem>>
    %273 = vector.broadcast %272 : f32 to vector<8x128xf32>
    %274 = arith.mulf %273, %13 : vector<8x128xf32>
    %c41 = arith.constant 41 : index
    %275 = memref.load %arg4[%c41] : memref<100xf32, #tpu.memory_space<smem>>
    %276 = vector.broadcast %275 : f32 to vector<8x128xf32>
    %277 = arith.mulf %276, %13 : vector<8x128xf32>
    %c42 = arith.constant 42 : index
    %278 = memref.load %arg4[%c42] : memref<100xf32, #tpu.memory_space<smem>>
    %279 = vector.broadcast %278 : f32 to vector<8x128xf32>
    %280 = arith.mulf %279, %25 : vector<8x128xf32>
    %281 = arith.addf %274, %280 : vector<8x128xf32>
    %c43 = arith.constant 43 : index
    %282 = memref.load %arg4[%c43] : memref<100xf32, #tpu.memory_space<smem>>
    %283 = vector.broadcast %282 : f32 to vector<8x128xf32>
    %284 = arith.mulf %283, %25 : vector<8x128xf32>
    %285 = arith.addf %277, %284 : vector<8x128xf32>
    %c44 = arith.constant 44 : index
    %286 = memref.load %arg4[%c44] : memref<100xf32, #tpu.memory_space<smem>>
    %287 = vector.broadcast %286 : f32 to vector<8x128xf32>
    %288 = arith.mulf %287, %37 : vector<8x128xf32>
    %289 = arith.addf %281, %288 : vector<8x128xf32>
    %c45 = arith.constant 45 : index
    %290 = memref.load %arg4[%c45] : memref<100xf32, #tpu.memory_space<smem>>
    %291 = vector.broadcast %290 : f32 to vector<8x128xf32>
    %292 = arith.mulf %291, %37 : vector<8x128xf32>
    %293 = arith.addf %285, %292 : vector<8x128xf32>
    %c46 = arith.constant 46 : index
    %294 = memref.load %arg4[%c46] : memref<100xf32, #tpu.memory_space<smem>>
    %295 = vector.broadcast %294 : f32 to vector<8x128xf32>
    %296 = arith.mulf %295, %49 : vector<8x128xf32>
    %297 = arith.addf %289, %296 : vector<8x128xf32>
    %c47 = arith.constant 47 : index
    %298 = memref.load %arg4[%c47] : memref<100xf32, #tpu.memory_space<smem>>
    %299 = vector.broadcast %298 : f32 to vector<8x128xf32>
    %300 = arith.mulf %299, %49 : vector<8x128xf32>
    %301 = arith.addf %293, %300 : vector<8x128xf32>
    %c48 = arith.constant 48 : index
    %302 = memref.load %arg4[%c48] : memref<100xf32, #tpu.memory_space<smem>>
    %303 = vector.broadcast %302 : f32 to vector<8x128xf32>
    %304 = arith.mulf %303, %61 : vector<8x128xf32>
    %305 = arith.addf %297, %304 : vector<8x128xf32>
    %c49 = arith.constant 49 : index
    %306 = memref.load %arg4[%c49] : memref<100xf32, #tpu.memory_space<smem>>
    %307 = vector.broadcast %306 : f32 to vector<8x128xf32>
    %308 = arith.mulf %307, %61 : vector<8x128xf32>
    %309 = arith.addf %301, %308 : vector<8x128xf32>
    %c127_i32_41 = arith.constant 127 : i32
    %310 = tpu.dynamic_rotate %309 by %c127_i32_41 dim 1 : vector<8x128xf32>, i32 -> vector<8x128xf32>
    %311 = arith.addf %305, %310 : vector<8x128xf32>
    %c4_42 = arith.constant 4 : index
    %312 = memref.load %arg5[%c4_42] : memref<10xf32, #tpu.memory_space<smem>>
    %313 = vector.broadcast %312 : f32 to vector<8x128xf32>
    %314 = arith.addf %311, %313 : vector<8x128xf32>
    %cst_43 = arith.constant 0.000000e+00 : f32
    %315 = vector.broadcast %cst_43 : f32 to vector<8x128xf32>
    %316 = arith.maximumf %314, %315 : vector<8x128xf32>
    %c8_44 = arith.constant 8 : index
    %317 = memref.load %arg6[%c8_44] : memref<20xf32, #tpu.memory_space<smem>>
    %318 = vector.broadcast %317 : f32 to vector<8x128xf32>
    %319 = arith.mulf %318, %316 : vector<8x128xf32>
    %c9_45 = arith.constant 9 : index
    %320 = memref.load %arg6[%c9_45] : memref<20xf32, #tpu.memory_space<smem>>
    %321 = vector.broadcast %320 : f32 to vector<8x128xf32>
    %322 = arith.mulf %321, %316 : vector<8x128xf32>
    %323 = arith.addf %270, %319 : vector<8x128xf32>
    %324 = arith.addf %271, %322 : vector<8x128xf32>
    %c50 = arith.constant 50 : index
    %325 = memref.load %arg4[%c50] : memref<100xf32, #tpu.memory_space<smem>>
    %326 = vector.broadcast %325 : f32 to vector<8x128xf32>
    %327 = arith.mulf %326, %13 : vector<8x128xf32>
    %c51 = arith.constant 51 : index
    %328 = memref.load %arg4[%c51] : memref<100xf32, #tpu.memory_space<smem>>
    %329 = vector.broadcast %328 : f32 to vector<8x128xf32>
    %330 = arith.mulf %329, %13 : vector<8x128xf32>
    %c52 = arith.constant 52 : index
    %331 = memref.load %arg4[%c52] : memref<100xf32, #tpu.memory_space<smem>>
    %332 = vector.broadcast %331 : f32 to vector<8x128xf32>
    %333 = arith.mulf %332, %25 : vector<8x128xf32>
    %334 = arith.addf %327, %333 : vector<8x128xf32>
    %c53 = arith.constant 53 : index
    %335 = memref.load %arg4[%c53] : memref<100xf32, #tpu.memory_space<smem>>
    %336 = vector.broadcast %335 : f32 to vector<8x128xf32>
    %337 = arith.mulf %336, %25 : vector<8x128xf32>
    %338 = arith.addf %330, %337 : vector<8x128xf32>
    %c54 = arith.constant 54 : index
    %339 = memref.load %arg4[%c54] : memref<100xf32, #tpu.memory_space<smem>>
    %340 = vector.broadcast %339 : f32 to vector<8x128xf32>
    %341 = arith.mulf %340, %37 : vector<8x128xf32>
    %342 = arith.addf %334, %341 : vector<8x128xf32>
    %c55 = arith.constant 55 : index
    %343 = memref.load %arg4[%c55] : memref<100xf32, #tpu.memory_space<smem>>
    %344 = vector.broadcast %343 : f32 to vector<8x128xf32>
    %345 = arith.mulf %344, %37 : vector<8x128xf32>
    %346 = arith.addf %338, %345 : vector<8x128xf32>
    %c56 = arith.constant 56 : index
    %347 = memref.load %arg4[%c56] : memref<100xf32, #tpu.memory_space<smem>>
    %348 = vector.broadcast %347 : f32 to vector<8x128xf32>
    %349 = arith.mulf %348, %49 : vector<8x128xf32>
    %350 = arith.addf %342, %349 : vector<8x128xf32>
    %c57 = arith.constant 57 : index
    %351 = memref.load %arg4[%c57] : memref<100xf32, #tpu.memory_space<smem>>
    %352 = vector.broadcast %351 : f32 to vector<8x128xf32>
    %353 = arith.mulf %352, %49 : vector<8x128xf32>
    %354 = arith.addf %346, %353 : vector<8x128xf32>
    %c58 = arith.constant 58 : index
    %355 = memref.load %arg4[%c58] : memref<100xf32, #tpu.memory_space<smem>>
    %356 = vector.broadcast %355 : f32 to vector<8x128xf32>
    %357 = arith.mulf %356, %61 : vector<8x128xf32>
    %358 = arith.addf %350, %357 : vector<8x128xf32>
    %c59 = arith.constant 59 : index
    %359 = memref.load %arg4[%c59] : memref<100xf32, #tpu.memory_space<smem>>
    %360 = vector.broadcast %359 : f32 to vector<8x128xf32>
    %361 = arith.mulf %360, %61 : vector<8x128xf32>
    %362 = arith.addf %354, %361 : vector<8x128xf32>
    %c127_i32_46 = arith.constant 127 : i32
    %363 = tpu.dynamic_rotate %362 by %c127_i32_46 dim 1 : vector<8x128xf32>, i32 -> vector<8x128xf32>
    %364 = arith.addf %358, %363 : vector<8x128xf32>
    %c5_47 = arith.constant 5 : index
    %365 = memref.load %arg5[%c5_47] : memref<10xf32, #tpu.memory_space<smem>>
    %366 = vector.broadcast %365 : f32 to vector<8x128xf32>
    %367 = arith.addf %364, %366 : vector<8x128xf32>
    %cst_48 = arith.constant 0.000000e+00 : f32
    %368 = vector.broadcast %cst_48 : f32 to vector<8x128xf32>
    %369 = arith.maximumf %367, %368 : vector<8x128xf32>
    %c10_49 = arith.constant 10 : index
    %370 = memref.load %arg6[%c10_49] : memref<20xf32, #tpu.memory_space<smem>>
    %371 = vector.broadcast %370 : f32 to vector<8x128xf32>
    %372 = arith.mulf %371, %369 : vector<8x128xf32>
    %c11_50 = arith.constant 11 : index
    %373 = memref.load %arg6[%c11_50] : memref<20xf32, #tpu.memory_space<smem>>
    %374 = vector.broadcast %373 : f32 to vector<8x128xf32>
    %375 = arith.mulf %374, %369 : vector<8x128xf32>
    %376 = arith.addf %323, %372 : vector<8x128xf32>
    %377 = arith.addf %324, %375 : vector<8x128xf32>
    %c60 = arith.constant 60 : index
    %378 = memref.load %arg4[%c60] : memref<100xf32, #tpu.memory_space<smem>>
    %379 = vector.broadcast %378 : f32 to vector<8x128xf32>
    %380 = arith.mulf %379, %13 : vector<8x128xf32>
    %c61 = arith.constant 61 : index
    %381 = memref.load %arg4[%c61] : memref<100xf32, #tpu.memory_space<smem>>
    %382 = vector.broadcast %381 : f32 to vector<8x128xf32>
    %383 = arith.mulf %382, %13 : vector<8x128xf32>
    %c62 = arith.constant 62 : index
    %384 = memref.load %arg4[%c62] : memref<100xf32, #tpu.memory_space<smem>>
    %385 = vector.broadcast %384 : f32 to vector<8x128xf32>
    %386 = arith.mulf %385, %25 : vector<8x128xf32>
    %387 = arith.addf %380, %386 : vector<8x128xf32>
    %c63 = arith.constant 63 : index
    %388 = memref.load %arg4[%c63] : memref<100xf32, #tpu.memory_space<smem>>
    %389 = vector.broadcast %388 : f32 to vector<8x128xf32>
    %390 = arith.mulf %389, %25 : vector<8x128xf32>
    %391 = arith.addf %383, %390 : vector<8x128xf32>
    %c64 = arith.constant 64 : index
    %392 = memref.load %arg4[%c64] : memref<100xf32, #tpu.memory_space<smem>>
    %393 = vector.broadcast %392 : f32 to vector<8x128xf32>
    %394 = arith.mulf %393, %37 : vector<8x128xf32>
    %395 = arith.addf %387, %394 : vector<8x128xf32>
    %c65 = arith.constant 65 : index
    %396 = memref.load %arg4[%c65] : memref<100xf32, #tpu.memory_space<smem>>
    %397 = vector.broadcast %396 : f32 to vector<8x128xf32>
    %398 = arith.mulf %397, %37 : vector<8x128xf32>
    %399 = arith.addf %391, %398 : vector<8x128xf32>
    %c66 = arith.constant 66 : index
    %400 = memref.load %arg4[%c66] : memref<100xf32, #tpu.memory_space<smem>>
    %401 = vector.broadcast %400 : f32 to vector<8x128xf32>
    %402 = arith.mulf %401, %49 : vector<8x128xf32>
    %403 = arith.addf %395, %402 : vector<8x128xf32>
    %c67 = arith.constant 67 : index
    %404 = memref.load %arg4[%c67] : memref<100xf32, #tpu.memory_space<smem>>
    %405 = vector.broadcast %404 : f32 to vector<8x128xf32>
    %406 = arith.mulf %405, %49 : vector<8x128xf32>
    %407 = arith.addf %399, %406 : vector<8x128xf32>
    %c68 = arith.constant 68 : index
    %408 = memref.load %arg4[%c68] : memref<100xf32, #tpu.memory_space<smem>>
    %409 = vector.broadcast %408 : f32 to vector<8x128xf32>
    %410 = arith.mulf %409, %61 : vector<8x128xf32>
    %411 = arith.addf %403, %410 : vector<8x128xf32>
    %c69 = arith.constant 69 : index
    %412 = memref.load %arg4[%c69] : memref<100xf32, #tpu.memory_space<smem>>
    %413 = vector.broadcast %412 : f32 to vector<8x128xf32>
    %414 = arith.mulf %413, %61 : vector<8x128xf32>
    %415 = arith.addf %407, %414 : vector<8x128xf32>
    %c127_i32_51 = arith.constant 127 : i32
    %416 = tpu.dynamic_rotate %415 by %c127_i32_51 dim 1 : vector<8x128xf32>, i32 -> vector<8x128xf32>
    %417 = arith.addf %411, %416 : vector<8x128xf32>
    %c6_52 = arith.constant 6 : index
    %418 = memref.load %arg5[%c6_52] : memref<10xf32, #tpu.memory_space<smem>>
    %419 = vector.broadcast %418 : f32 to vector<8x128xf32>
    %420 = arith.addf %417, %419 : vector<8x128xf32>
    %cst_53 = arith.constant 0.000000e+00 : f32
    %421 = vector.broadcast %cst_53 : f32 to vector<8x128xf32>
    %422 = arith.maximumf %420, %421 : vector<8x128xf32>
    %c12_54 = arith.constant 12 : index
    %423 = memref.load %arg6[%c12_54] : memref<20xf32, #tpu.memory_space<smem>>
    %424 = vector.broadcast %423 : f32 to vector<8x128xf32>
    %425 = arith.mulf %424, %422 : vector<8x128xf32>
    %c13_55 = arith.constant 13 : index
    %426 = memref.load %arg6[%c13_55] : memref<20xf32, #tpu.memory_space<smem>>
    %427 = vector.broadcast %426 : f32 to vector<8x128xf32>
    %428 = arith.mulf %427, %422 : vector<8x128xf32>
    %429 = arith.addf %376, %425 : vector<8x128xf32>
    %430 = arith.addf %377, %428 : vector<8x128xf32>
    %c70 = arith.constant 70 : index
    %431 = memref.load %arg4[%c70] : memref<100xf32, #tpu.memory_space<smem>>
    %432 = vector.broadcast %431 : f32 to vector<8x128xf32>
    %433 = arith.mulf %432, %13 : vector<8x128xf32>
    %c71 = arith.constant 71 : index
    %434 = memref.load %arg4[%c71] : memref<100xf32, #tpu.memory_space<smem>>
    %435 = vector.broadcast %434 : f32 to vector<8x128xf32>
    %436 = arith.mulf %435, %13 : vector<8x128xf32>
    %c72 = arith.constant 72 : index
    %437 = memref.load %arg4[%c72] : memref<100xf32, #tpu.memory_space<smem>>
    %438 = vector.broadcast %437 : f32 to vector<8x128xf32>
    %439 = arith.mulf %438, %25 : vector<8x128xf32>
    %440 = arith.addf %433, %439 : vector<8x128xf32>
    %c73 = arith.constant 73 : index
    %441 = memref.load %arg4[%c73] : memref<100xf32, #tpu.memory_space<smem>>
    %442 = vector.broadcast %441 : f32 to vector<8x128xf32>
    %443 = arith.mulf %442, %25 : vector<8x128xf32>
    %444 = arith.addf %436, %443 : vector<8x128xf32>
    %c74 = arith.constant 74 : index
    %445 = memref.load %arg4[%c74] : memref<100xf32, #tpu.memory_space<smem>>
    %446 = vector.broadcast %445 : f32 to vector<8x128xf32>
    %447 = arith.mulf %446, %37 : vector<8x128xf32>
    %448 = arith.addf %440, %447 : vector<8x128xf32>
    %c75 = arith.constant 75 : index
    %449 = memref.load %arg4[%c75] : memref<100xf32, #tpu.memory_space<smem>>
    %450 = vector.broadcast %449 : f32 to vector<8x128xf32>
    %451 = arith.mulf %450, %37 : vector<8x128xf32>
    %452 = arith.addf %444, %451 : vector<8x128xf32>
    %c76 = arith.constant 76 : index
    %453 = memref.load %arg4[%c76] : memref<100xf32, #tpu.memory_space<smem>>
    %454 = vector.broadcast %453 : f32 to vector<8x128xf32>
    %455 = arith.mulf %454, %49 : vector<8x128xf32>
    %456 = arith.addf %448, %455 : vector<8x128xf32>
    %c77 = arith.constant 77 : index
    %457 = memref.load %arg4[%c77] : memref<100xf32, #tpu.memory_space<smem>>
    %458 = vector.broadcast %457 : f32 to vector<8x128xf32>
    %459 = arith.mulf %458, %49 : vector<8x128xf32>
    %460 = arith.addf %452, %459 : vector<8x128xf32>
    %c78 = arith.constant 78 : index
    %461 = memref.load %arg4[%c78] : memref<100xf32, #tpu.memory_space<smem>>
    %462 = vector.broadcast %461 : f32 to vector<8x128xf32>
    %463 = arith.mulf %462, %61 : vector<8x128xf32>
    %464 = arith.addf %456, %463 : vector<8x128xf32>
    %c79 = arith.constant 79 : index
    %465 = memref.load %arg4[%c79] : memref<100xf32, #tpu.memory_space<smem>>
    %466 = vector.broadcast %465 : f32 to vector<8x128xf32>
    %467 = arith.mulf %466, %61 : vector<8x128xf32>
    %468 = arith.addf %460, %467 : vector<8x128xf32>
    %c127_i32_56 = arith.constant 127 : i32
    %469 = tpu.dynamic_rotate %468 by %c127_i32_56 dim 1 : vector<8x128xf32>, i32 -> vector<8x128xf32>
    %470 = arith.addf %464, %469 : vector<8x128xf32>
    %c7_57 = arith.constant 7 : index
    %471 = memref.load %arg5[%c7_57] : memref<10xf32, #tpu.memory_space<smem>>
    %472 = vector.broadcast %471 : f32 to vector<8x128xf32>
    %473 = arith.addf %470, %472 : vector<8x128xf32>
    %cst_58 = arith.constant 0.000000e+00 : f32
    %474 = vector.broadcast %cst_58 : f32 to vector<8x128xf32>
    %475 = arith.maximumf %473, %474 : vector<8x128xf32>
    %c14_59 = arith.constant 14 : index
    %476 = memref.load %arg6[%c14_59] : memref<20xf32, #tpu.memory_space<smem>>
    %477 = vector.broadcast %476 : f32 to vector<8x128xf32>
    %478 = arith.mulf %477, %475 : vector<8x128xf32>
    %c15_60 = arith.constant 15 : index
    %479 = memref.load %arg6[%c15_60] : memref<20xf32, #tpu.memory_space<smem>>
    %480 = vector.broadcast %479 : f32 to vector<8x128xf32>
    %481 = arith.mulf %480, %475 : vector<8x128xf32>
    %482 = arith.addf %429, %478 : vector<8x128xf32>
    %483 = arith.addf %430, %481 : vector<8x128xf32>
    %c80 = arith.constant 80 : index
    %484 = memref.load %arg4[%c80] : memref<100xf32, #tpu.memory_space<smem>>
    %485 = vector.broadcast %484 : f32 to vector<8x128xf32>
    %486 = arith.mulf %485, %13 : vector<8x128xf32>
    %c81 = arith.constant 81 : index
    %487 = memref.load %arg4[%c81] : memref<100xf32, #tpu.memory_space<smem>>
    %488 = vector.broadcast %487 : f32 to vector<8x128xf32>
    %489 = arith.mulf %488, %13 : vector<8x128xf32>
    %c82 = arith.constant 82 : index
    %490 = memref.load %arg4[%c82] : memref<100xf32, #tpu.memory_space<smem>>
    %491 = vector.broadcast %490 : f32 to vector<8x128xf32>
    %492 = arith.mulf %491, %25 : vector<8x128xf32>
    %493 = arith.addf %486, %492 : vector<8x128xf32>
    %c83 = arith.constant 83 : index
    %494 = memref.load %arg4[%c83] : memref<100xf32, #tpu.memory_space<smem>>
    %495 = vector.broadcast %494 : f32 to vector<8x128xf32>
    %496 = arith.mulf %495, %25 : vector<8x128xf32>
    %497 = arith.addf %489, %496 : vector<8x128xf32>
    %c84 = arith.constant 84 : index
    %498 = memref.load %arg4[%c84] : memref<100xf32, #tpu.memory_space<smem>>
    %499 = vector.broadcast %498 : f32 to vector<8x128xf32>
    %500 = arith.mulf %499, %37 : vector<8x128xf32>
    %501 = arith.addf %493, %500 : vector<8x128xf32>
    %c85 = arith.constant 85 : index
    %502 = memref.load %arg4[%c85] : memref<100xf32, #tpu.memory_space<smem>>
    %503 = vector.broadcast %502 : f32 to vector<8x128xf32>
    %504 = arith.mulf %503, %37 : vector<8x128xf32>
    %505 = arith.addf %497, %504 : vector<8x128xf32>
    %c86 = arith.constant 86 : index
    %506 = memref.load %arg4[%c86] : memref<100xf32, #tpu.memory_space<smem>>
    %507 = vector.broadcast %506 : f32 to vector<8x128xf32>
    %508 = arith.mulf %507, %49 : vector<8x128xf32>
    %509 = arith.addf %501, %508 : vector<8x128xf32>
    %c87 = arith.constant 87 : index
    %510 = memref.load %arg4[%c87] : memref<100xf32, #tpu.memory_space<smem>>
    %511 = vector.broadcast %510 : f32 to vector<8x128xf32>
    %512 = arith.mulf %511, %49 : vector<8x128xf32>
    %513 = arith.addf %505, %512 : vector<8x128xf32>
    %c88 = arith.constant 88 : index
    %514 = memref.load %arg4[%c88] : memref<100xf32, #tpu.memory_space<smem>>
    %515 = vector.broadcast %514 : f32 to vector<8x128xf32>
    %516 = arith.mulf %515, %61 : vector<8x128xf32>
    %517 = arith.addf %509, %516 : vector<8x128xf32>
    %c89 = arith.constant 89 : index
    %518 = memref.load %arg4[%c89] : memref<100xf32, #tpu.memory_space<smem>>
    %519 = vector.broadcast %518 : f32 to vector<8x128xf32>
    %520 = arith.mulf %519, %61 : vector<8x128xf32>
    %521 = arith.addf %513, %520 : vector<8x128xf32>
    %c127_i32_61 = arith.constant 127 : i32
    %522 = tpu.dynamic_rotate %521 by %c127_i32_61 dim 1 : vector<8x128xf32>, i32 -> vector<8x128xf32>
    %523 = arith.addf %517, %522 : vector<8x128xf32>
    %c8_62 = arith.constant 8 : index
    %524 = memref.load %arg5[%c8_62] : memref<10xf32, #tpu.memory_space<smem>>
    %525 = vector.broadcast %524 : f32 to vector<8x128xf32>
    %526 = arith.addf %523, %525 : vector<8x128xf32>
    %cst_63 = arith.constant 0.000000e+00 : f32
    %527 = vector.broadcast %cst_63 : f32 to vector<8x128xf32>
    %528 = arith.maximumf %526, %527 : vector<8x128xf32>
    %c16_64 = arith.constant 16 : index
    %529 = memref.load %arg6[%c16_64] : memref<20xf32, #tpu.memory_space<smem>>
    %530 = vector.broadcast %529 : f32 to vector<8x128xf32>
    %531 = arith.mulf %530, %528 : vector<8x128xf32>
    %c17_65 = arith.constant 17 : index
    %532 = memref.load %arg6[%c17_65] : memref<20xf32, #tpu.memory_space<smem>>
    %533 = vector.broadcast %532 : f32 to vector<8x128xf32>
    %534 = arith.mulf %533, %528 : vector<8x128xf32>
    %535 = arith.addf %482, %531 : vector<8x128xf32>
    %536 = arith.addf %483, %534 : vector<8x128xf32>
    %c90 = arith.constant 90 : index
    %537 = memref.load %arg4[%c90] : memref<100xf32, #tpu.memory_space<smem>>
    %538 = vector.broadcast %537 : f32 to vector<8x128xf32>
    %539 = arith.mulf %538, %13 : vector<8x128xf32>
    %c91 = arith.constant 91 : index
    %540 = memref.load %arg4[%c91] : memref<100xf32, #tpu.memory_space<smem>>
    %541 = vector.broadcast %540 : f32 to vector<8x128xf32>
    %542 = arith.mulf %541, %13 : vector<8x128xf32>
    %c92 = arith.constant 92 : index
    %543 = memref.load %arg4[%c92] : memref<100xf32, #tpu.memory_space<smem>>
    %544 = vector.broadcast %543 : f32 to vector<8x128xf32>
    %545 = arith.mulf %544, %25 : vector<8x128xf32>
    %546 = arith.addf %539, %545 : vector<8x128xf32>
    %c93 = arith.constant 93 : index
    %547 = memref.load %arg4[%c93] : memref<100xf32, #tpu.memory_space<smem>>
    %548 = vector.broadcast %547 : f32 to vector<8x128xf32>
    %549 = arith.mulf %548, %25 : vector<8x128xf32>
    %550 = arith.addf %542, %549 : vector<8x128xf32>
    %c94 = arith.constant 94 : index
    %551 = memref.load %arg4[%c94] : memref<100xf32, #tpu.memory_space<smem>>
    %552 = vector.broadcast %551 : f32 to vector<8x128xf32>
    %553 = arith.mulf %552, %37 : vector<8x128xf32>
    %554 = arith.addf %546, %553 : vector<8x128xf32>
    %c95 = arith.constant 95 : index
    %555 = memref.load %arg4[%c95] : memref<100xf32, #tpu.memory_space<smem>>
    %556 = vector.broadcast %555 : f32 to vector<8x128xf32>
    %557 = arith.mulf %556, %37 : vector<8x128xf32>
    %558 = arith.addf %550, %557 : vector<8x128xf32>
    %c96 = arith.constant 96 : index
    %559 = memref.load %arg4[%c96] : memref<100xf32, #tpu.memory_space<smem>>
    %560 = vector.broadcast %559 : f32 to vector<8x128xf32>
    %561 = arith.mulf %560, %49 : vector<8x128xf32>
    %562 = arith.addf %554, %561 : vector<8x128xf32>
    %c97 = arith.constant 97 : index
    %563 = memref.load %arg4[%c97] : memref<100xf32, #tpu.memory_space<smem>>
    %564 = vector.broadcast %563 : f32 to vector<8x128xf32>
    %565 = arith.mulf %564, %49 : vector<8x128xf32>
    %566 = arith.addf %558, %565 : vector<8x128xf32>
    %c98 = arith.constant 98 : index
    %567 = memref.load %arg4[%c98] : memref<100xf32, #tpu.memory_space<smem>>
    %568 = vector.broadcast %567 : f32 to vector<8x128xf32>
    %569 = arith.mulf %568, %61 : vector<8x128xf32>
    %570 = arith.addf %562, %569 : vector<8x128xf32>
    %c99 = arith.constant 99 : index
    %571 = memref.load %arg4[%c99] : memref<100xf32, #tpu.memory_space<smem>>
    %572 = vector.broadcast %571 : f32 to vector<8x128xf32>
    %573 = arith.mulf %572, %61 : vector<8x128xf32>
    %574 = arith.addf %566, %573 : vector<8x128xf32>
    %c127_i32_66 = arith.constant 127 : i32
    %575 = tpu.dynamic_rotate %574 by %c127_i32_66 dim 1 : vector<8x128xf32>, i32 -> vector<8x128xf32>
    %576 = arith.addf %570, %575 : vector<8x128xf32>
    %c9_67 = arith.constant 9 : index
    %577 = memref.load %arg5[%c9_67] : memref<10xf32, #tpu.memory_space<smem>>
    %578 = vector.broadcast %577 : f32 to vector<8x128xf32>
    %579 = arith.addf %576, %578 : vector<8x128xf32>
    %cst_68 = arith.constant 0.000000e+00 : f32
    %580 = vector.broadcast %cst_68 : f32 to vector<8x128xf32>
    %581 = arith.maximumf %579, %580 : vector<8x128xf32>
    %c18_69 = arith.constant 18 : index
    %582 = memref.load %arg6[%c18_69] : memref<20xf32, #tpu.memory_space<smem>>
    %583 = vector.broadcast %582 : f32 to vector<8x128xf32>
    %584 = arith.mulf %583, %581 : vector<8x128xf32>
    %c19_70 = arith.constant 19 : index
    %585 = memref.load %arg6[%c19_70] : memref<20xf32, #tpu.memory_space<smem>>
    %586 = vector.broadcast %585 : f32 to vector<8x128xf32>
    %587 = arith.mulf %586, %581 : vector<8x128xf32>
    %588 = arith.addf %535, %584 : vector<8x128xf32>
    %589 = arith.addf %536, %587 : vector<8x128xf32>
    %c127_i32_71 = arith.constant 127 : i32
    %590 = tpu.dynamic_rotate %589 by %c127_i32_71 dim 1 : vector<8x128xf32>, i32 -> vector<8x128xf32>
    %591 = arith.addf %588, %590 : vector<8x128xf32>
    %c0_72 = arith.constant 0 : index
    %592 = memref.load %arg7[%c0_72] : memref<1xf32, #tpu.memory_space<smem>>
    %593 = vector.broadcast %592 : f32 to vector<8x128xf32>
    %594 = arith.addf %591, %593 : vector<8x128xf32>
    %595 = math.roundeven %594 : vector<8x128xf32>
    %c0_73 = arith.constant 0 : index
    %c0_74 = arith.constant 0 : index
    %596 = vector.load %arg8[%c0_73, %c0_74] : memref<8x128xf32, #tpu.memory_space<vmem>>, vector<8x128xf32>
    tpu.vector_store %arg8[%c0_73, %c0_74], %595 {strides = array<i32>} : memref<8x128xf32, #tpu.memory_space<vmem>>, vector<8x128xf32>,
    return
  }
  func.func @transform_0(%arg0: i32) -> (i32, i32) {
    %c0_i32 = arith.constant 0 : i32
    %c0_i32_0 = arith.constant 0 : i32
    return %arg0, %c0_i32 : i32, i32
  }
  func.func @transform_1(%arg0: i32) -> i32 {
    %c0_i32 = arith.constant 0 : i32
    %c0_i32_0 = arith.constant 0 : i32
    return %c0_i32 : i32
  }
  func.func @transform_2(%arg0: i32) -> i32 {
    %c0_i32 = arith.constant 0 : i32
    %c0_i32_0 = arith.constant 0 : i32
    return %c0_i32 : i32
  }
  func.func @transform_3(%arg0: i32) -> i32 {
    %c0_i32 = arith.constant 0 : i32
    %c0_i32_0 = arith.constant 0 : i32
    return %c0_i32 : i32
  }
  func.func @transform_4(%arg0: i32) -> i32 {
    %c0_i32 = arith.constant 0 : i32
    %c0_i32_0 = arith.constant 0 : i32
    return %c0_i32 : i32
  }
  func.func @transform_5(%arg0: i32) -> i32 {
    %c0_i32 = arith.constant 0 : i32
    %c0_i32_0 = arith.constant 0 : i32
    return %c0_i32 : i32
  }
  func.func @transform_6(%arg0: i32) -> i32 {
    %c0_i32 = arith.constant 0 : i32
    %c0_i32_0 = arith.constant 0 : i32
    return %c0_i32 : i32
  }
  func.func @transform_7(%arg0: i32) -> (i32, i32) {
    %c0_i32 = arith.constant 0 : i32
    %c0_i32_0 = arith.constant 0 : i32
    return %arg0, %c0_i32 : i32, i32
  }
}

</mosaic_0001>

<llo_original>
// kernel: tpu_custom_call.1
$region0: #{tpu_custom_call.1}
  #allocation0 [shape = 'u32[]', space=smem, size = 0x4, offset = 0x4, fixed_abs, tag = 'smem constant byte address 0x4 - core index']
  #allocation1 [shape = 'u32[144,128]{1,0:T(1,128)}', space=vmem, size = 0x12000, scoped, tag = 'internal scratch']
  #allocation2 [shape = 'f32[1]{0:T(128)S(6)}', space=smem, size = 0x200, scoped, tag = 'scoped memory for tpu_custom_call.1']
  %s0 = inlined_call_operand.hbm [shape: f32[8,128], index: 0, kind: input, shape index: {}]
  %s1 = inlined_call_operand.vmem [shape: f32[10], index: 1, kind: input, shape index: {}]
  %s2 = inlined_call_operand.vmem [shape: f32[5], index: 2, kind: input, shape index: {}]
  %s3 = inlined_call_operand.vmem [shape: f32[100], index: 3, kind: input, shape index: {}]
  %s4 = inlined_call_operand.vmem [shape: f32[10], index: 4, kind: input, shape index: {}]
  %s5 = inlined_call_operand.vmem [shape: f32[20], index: 5, kind: input, shape index: {}]
  %s6 = inlined_call_operand.<no memory space> [shape: f32[1], index: 6, kind: input, shape index: {}]
  %s7 = inlined_call_operand.hbm [shape: f32[8,128], index: 7, kind: output, shape index: {}]
  %s8 = sld [smem:[#allocation0]]
  $region62: #{tpu_custom_call.1} parent=0
    _
  %s10 = ssub.s32 1, %s8
  %s11 = scalar_select 0, %s10, %s8
  %12 = sst [smem:[#allocation2]] %s6
  $region1: #{tpu_custom_call.1} parent=0
    #allocation3 [shape = 'u8[4096]{0}', space=vmem, size = 0x1000, scoped, tag = 'input window, operand 0, single buffered']
    #allocation4 [shape = 's32[1]{0}', space=sflag, size = 0x4, scoped, tag = 'scoped memory for tpu_custom_call.1']
    #allocation5 [shape = 's32[1]{0}', space=sflag, size = 0x4, scoped, tag = 'scoped memory for tpu_custom_call.1']
    #allocation6 [shape = 's32[1]{0}', space=sflag, size = 0x4, scoped, tag = 'scoped memory for tpu_custom_call.1']
    #allocation7 [shape = 'u8[512]{0}', space=smem, size = 0x200, scoped, tag = 'input window, operand 1, single buffered']
    #allocation8 [shape = 'u8[512]{0}', space=smem, size = 0x200, scoped, tag = 'input window, operand 2, single buffered']
    #allocation9 [shape = 's32[1]{0}', space=sflag, size = 0x4, scoped, tag = 'scoped memory for tpu_custom_call.1']
    #allocation10 [shape = 'u8[512]{0}', space=smem, size = 0x200, scoped, tag = 'input window, operand 3, single buffered']
    #allocation11 [shape = 'u8[512]{0}', space=smem, size = 0x200, scoped, tag = 'input window, operand 4, single buffered']
    #allocation12 [shape = 's32[1]{0}', space=sflag, size = 0x4, scoped, tag = 'scoped memory for tpu_custom_call.1']
    #allocation13 [shape = 'u8[512]{0}', space=smem, size = 0x200, scoped, tag = 'input window, operand 5, single buffered']
    #allocation14 [shape = 'u8[4096]{0}', space=vmem, size = 0x1000, scoped, tag = 'output window, operand 0, single buffered']
    %13 = vsyncpa [#allocation4], 0
    %14 = vsyncpa [#allocation6], 0
    %15 = vsyncpa [#allocation9], 0
    %16 = vsyncpa [#allocation12], 0
    %17 = vsyncpa [#allocation5], 0
    // Predicated region
    $region2: #{tpu_custom_call.1} parent=1 // pred_check
      _
    $region3: #{tpu_custom_call.1} parent=1 // pred_check_branch
      %19 = sbr.rel (0) target = $region5
    $region4: #{tpu_custom_call.1} parent=1 // pred_region
      %s21 = ssub.s32 128, 128
      %22 = vsyncadd [#allocation4], %s21
      %s24 = sshll.u32 [#allocation3], 4
      %s25 = int_to_ptr.vmem [resolvable:$true] %s24
      %27 = dma.hbm_to_vmem [thread:$0]  %s0, 128, %s25, [#allocation4]
    $region5: #{tpu_custom_call.1} parent=1 // pred_fallthru
      _
    // Predicated region
    $region6: #{tpu_custom_call.1} parent=1 // pred_check
      _
    $region7: #{tpu_custom_call.1} parent=1 // pred_check_branch
      %29 = sbr.rel (0) target = $region9
    $region8: #{tpu_custom_call.1} parent=1 // pred_region
      %s31 = ssub.s32 16, 16
      %32 = vsyncadd [#allocation6], %s31
      %s34 = sshll.u32 %s1, 4
      %s35 = int_to_ptr.vmem [resolvable:$true] %s34
      %37 = dma.vmem_to_smem %s35, 16, [#allocation7], [#allocation6]
    $region9: #{tpu_custom_call.1} parent=1 // pred_fallthru
      _
    // Predicated region
    $region10: #{tpu_custom_call.1} parent=1 // pred_check
      _
    $region11: #{tpu_custom_call.1} parent=1 // pred_check_branch
      %39 = sbr.rel (0) target = $region13
    $region12: #{tpu_custom_call.1} parent=1 // pred_region
      %s41 = ssub.s32 16, 16
      %42 = vsyncadd [#allocation9], %s41
      %s44 = sshll.u32 %s2, 4
      %s45 = int_to_ptr.vmem [resolvable:$true] %s44
      %47 = dma.vmem_to_smem %s45, 16, [#allocation8], [#allocation9]
    $region13: #{tpu_custom_call.1} parent=1 // pred_fallthru
      _
    // Predicated region
    $region14: #{tpu_custom_call.1} parent=1 // pred_check
      _
    $region15: #{tpu_custom_call.1} parent=1 // pred_check_branch
      %49 = sbr.rel (0) target = $region17
    $region16: #{tpu_custom_call.1} parent=1 // pred_region
      %s51 = ssub.s32 16, 16
      %52 = vsyncadd [#allocation9], %s51
      %s54 = sshll.u32 %s3, 4
      %s55 = int_to_ptr.vmem [resolvable:$true] %s54
      %57 = dma.vmem_to_smem %s55, 16, [#allocation10], [#allocation9]
    $region17: #{tpu_custom_call.1} parent=1 // pred_fallthru
      _
    // Predicated region
    $region18: #{tpu_custom_call.1} parent=1 // pred_check
      _
    $region19: #{tpu_custom_call.1} parent=1 // pred_check_branch
      %59 = sbr.rel (0) target = $region21
    $region20: #{tpu_custom_call.1} parent=1 // pred_region
      %s61 = ssub.s32 16, 16
      %62 = vsyncadd [#allocation12], %s61
      %s64 = sshll.u32 %s4, 4
      %s65 = int_to_ptr.vmem [resolvable:$true] %s64
      %67 = dma.vmem_to_smem %s65, 16, [#allocation11], [#allocation12]
    $region21: #{tpu_custom_call.1} parent=1 // pred_fallthru
      _
    // Predicated region
    $region22: #{tpu_custom_call.1} parent=1 // pred_check
      _
    $region23: #{tpu_custom_call.1} parent=1 // pred_check_branch
      %69 = sbr.rel (0) target = $region25
    $region24: #{tpu_custom_call.1} parent=1 // pred_region
      %s71 = ssub.s32 16, 16
      %72 = vsyncadd [#allocation12], %s71
      %s74 = sshll.u32 %s5, 4
      %s75 = int_to_ptr.vmem [resolvable:$true] %s74
      %77 = dma.vmem_to_smem %s75, 16, [#allocation13], [#allocation12]
    $region25: #{tpu_custom_call.1} parent=1 // pred_fallthru
      _
    // Predicated region
    $region26: #{tpu_custom_call.1} parent=1 // pred_check
      _
    $region27: #{tpu_custom_call.1} parent=1 // pred_check_branch
      %79 = sbr.rel (0) target = $region29
    $region28: #{tpu_custom_call.1} parent=1 // pred_region
      _
    $region29: #{tpu_custom_call.1} parent=1 // pred_fallthru
      _
    // Predicated region
    $region30: #{tpu_custom_call.1} parent=1 // pred_check
      _
    $region31: #{tpu_custom_call.1} parent=1 // pred_check_branch
      %81 = sbr.rel (0) target = $region33
    $region32: #{tpu_custom_call.1} parent=1 // pred_region
      %82 = dma.done [#allocation4], 128
    $region33: #{tpu_custom_call.1} parent=1 // pred_fallthru
      _
    // Predicated region
    $region34: #{tpu_custom_call.1} parent=1 // pred_check
      _
    $region35: #{tpu_custom_call.1} parent=1 // pred_check_branch
      %84 = sbr.rel (0) target = $region37
    $region36: #{tpu_custom_call.1} parent=1 // pred_region
      %85 = dma.done [#allocation6], 16
    $region37: #{tpu_custom_call.1} parent=1 // pred_fallthru
      _
    // Predicated region
    $region38: #{tpu_custom_call.1} parent=1 // pred_check
      _
    $region39: #{tpu_custom_call.1} parent=1 // pred_check_branch
      %87 = sbr.rel (0) target = $region41
    $region40: #{tpu_custom_call.1} parent=1 // pred_region
      %88 = dma.done [#allocation9], 16
    $region41: #{tpu_custom_call.1} parent=1 // pred_fallthru
      _
    // Predicated region
    $region42: #{tpu_custom_call.1} parent=1 // pred_check
      _
    $region43: #{tpu_custom_call.1} parent=1 // pred_check_branch
      %90 = sbr.rel (0) target = $region45
    $region44: #{tpu_custom_call.1} parent=1 // pred_region
      %91 = dma.done [#allocation9], 16
    $region45: #{tpu_custom_call.1} parent=1 // pred_fallthru
      _
    // Predicated region
    $region46: #{tpu_custom_call.1} parent=1 // pred_check
      _
    $region47: #{tpu_custom_call.1} parent=1 // pred_check_branch
      %93 = sbr.rel (0) target = $region49
    $region48: #{tpu_custom_call.1} parent=1 // pred_region
      %94 = dma.done [#allocation12], 16
    $region49: #{tpu_custom_call.1} parent=1 // pred_fallthru
      _
    // Predicated region
    $region50: #{tpu_custom_call.1} parent=1 // pred_check
      _
    $region51: #{tpu_custom_call.1} parent=1 // pred_check_branch
      %96 = sbr.rel (0) target = $region53
    $region52: #{tpu_custom_call.1} parent=1 // pred_region
      %97 = dma.done [#allocation12], 16
    $region53: #{tpu_custom_call.1} parent=1 // pred_fallthru
      _
    %98 = sfence
    %v99 = vld [vmem:[#allocation3] sm:$0xff]
    %100 = vrot.lane.b32.xlu0 %v99, 127
    %v101 = vpop.permute.xlu0 %100
    %s102 = sld [smem:[#allocation7]]
    %v103 = vstv %s102
    %v104 = vmul.f32 %v103, %v99
    %s105 = sld [smem:[#allocation7 + $0x1]]
    %v106 = vstv %s105
    %v107 = vmul.f32 %v106, %v101
    %v108 = vadd.f32 %v104, %v107
    %s109 = sld [smem:[#allocation8]]
    %v110 = vstv %s109
    %v111 = vadd.f32 %v108, %v110
    %v112 = vmax.f32 %v111, 0.0
    %s113 = sld [smem:[#allocation7 + $0x2]]
    %v114 = vstv %s113
    %v115 = vmul.f32 %v114, %v99
    %s116 = sld [smem:[#allocation7 + $0x3]]
    %v117 = vstv %s116
    %v118 = vmul.f32 %v117, %v101
    %v119 = vadd.f32 %v115, %v118
    %s120 = sld [smem:[#allocation8 + $0x1]]
    %v121 = vstv %s120
    %v122 = vadd.f32 %v119, %v121
    %v123 = vmax.f32 %v122, 0.0
    %s124 = sld [smem:[#allocation7 + $0x4]]
    %v125 = vstv %s124
    %v126 = vmul.f32 %v125, %v99
    %s127 = sld [smem:[#allocation7 + $0x5]]
    %v128 = vstv %s127
    %v129 = vmul.f32 %v128, %v101
    %v130 = vadd.f32 %v126, %v129
    %s131 = sld [smem:[#allocation8 + $0x2]]
    %v132 = vstv %s131
    %v133 = vadd.f32 %v130, %v132
    %v134 = vmax.f32 %v133, 0.0
    %s135 = sld [smem:[#allocation7 + $0x6]]
    %v136 = vstv %s135
    %v137 = vmul.f32 %v136, %v99
    %s138 = sld [smem:[#allocation7 + $0x7]]
    %v139 = vstv %s138
    %v140 = vmul.f32 %v139, %v101
    %v141 = vadd.f32 %v137, %v140
    %s142 = sld [smem:[#allocation8 + $0x3]]
    %v143 = vstv %s142
    %v144 = vadd.f32 %v141, %v143
    %v145 = vmax.f32 %v144, 0.0
    %s146 = sld [smem:[#allocation7 + $0x8]]
    %v147 = vstv %s146
    %v148 = vmul.f32 %v147, %v99
    %s149 = sld [smem:[#allocation7 + $0x9]]
    %v150 = vstv %s149
    %v151 = vmul.f32 %v150, %v101
    %v152 = vadd.f32 %v148, %v151
    %s153 = sld [smem:[#allocation8 + $0x4]]
    %v154 = vstv %s153
    %v155 = vadd.f32 %v152, %v154
    %v156 = vmax.f32 %v155, 0.0
    %s157 = sld [smem:[#allocation10]]
    %v158 = vstv %s157
    %v159 = vmul.f32 %v158, %v112
    %s160 = sld [smem:[#allocation10 + $0x1]]
    %v161 = vstv %s160
    %v162 = vmul.f32 %v161, %v112
    %s163 = sld [smem:[#allocation10 + $0x2]]
    %v164 = vstv %s163
    %v165 = vmul.f32 %v164, %v123
    %v166 = vadd.f32 %v159, %v165
    %s167 = sld [smem:[#allocation10 + $0x3]]
    %v168 = vstv %s167
    %v169 = vmul.f32 %v168, %v123
    %v170 = vadd.f32 %v162, %v169
    %s171 = sld [smem:[#allocation10 + $0x4]]
    %v172 = vstv %s171
    %v173 = vmul.f32 %v172, %v134
    %v174 = vadd.f32 %v166, %v173
    %s175 = sld [smem:[#allocation10 + $0x5]]
    %v176 = vstv %s175
    %v177 = vmul.f32 %v176, %v134
    %v178 = vadd.f32 %v170, %v177
    %s179 = sld [smem:[#allocation10 + $0x6]]
    %v180 = vstv %s179
    %v181 = vmul.f32 %v180, %v145
    %v182 = vadd.f32 %v174, %v181
    %s183 = sld [smem:[#allocation10 + $0x7]]
    %v184 = vstv %s183
    %v185 = vmul.f32 %v184, %v145
    %v186 = vadd.f32 %v178, %v185
    %s187 = sld [smem:[#allocation10 + $0x8]]
    %v188 = vstv %s187
    %v189 = vmul.f32 %v188, %v156
    %v190 = vadd.f32 %v182, %v189
    %s191 = sld [smem:[#allocation10 + $0x9]]
    %v192 = vstv %s191
    %v193 = vmul.f32 %v192, %v156
    %v194 = vadd.f32 %v186, %v193
    %195 = vrot.lane.b32.xlu0 %v194, 127
    %v196 = vpop.permute.xlu0 %195
    %v197 = vadd.f32 %v190, %v196
    %s198 = sld [smem:[#allocation11]]
    %v199 = vstv %s198
    %v200 = vadd.f32 %v197, %v199
    %v201 = vmax.f32 %v200, 0.0
    %s202 = sld [smem:[#allocation13]]
    %v203 = vstv %s202
    %v204 = vmul.f32 %v203, %v201
    %s205 = sld [smem:[#allocation13 + $0x1]]
    %v206 = vstv %s205
    %v207 = vmul.f32 %v206, %v201
    %s208 = sld [smem:[#allocation10 + $0xa]]
    %v209 = vstv %s208
    %v210 = vmul.f32 %v209, %v112
    %s211 = sld [smem:[#allocation10 + $0xb]]
    %v212 = vstv %s211
    %v213 = vmul.f32 %v212, %v112
    %s214 = sld [smem:[#allocation10 + $0xc]]
    %v215 = vstv %s214
    %v216 = vmul.f32 %v215, %v123
    %v217 = vadd.f32 %v210, %v216
    %s218 = sld [smem:[#allocation10 + $0xd]]
    %v219 = vstv %s218
    %v220 = vmul.f32 %v219, %v123
    %v221 = vadd.f32 %v213, %v220
    %s222 = sld [smem:[#allocation10 + $0xe]]
    %v223 = vstv %s222
    %v224 = vmul.f32 %v223, %v134
    %v225 = vadd.f32 %v217, %v224
    %s226 = sld [smem:[#allocation10 + $0xf]]
    %v227 = vstv %s226
    %v228 = vmul.f32 %v227, %v134
    %v229 = vadd.f32 %v221, %v228
    %s230 = sld [smem:[#allocation10 + $0x10]]
    %v231 = vstv %s230
    %v232 = vmul.f32 %v231, %v145
    %v233 = vadd.f32 %v225, %v232
    %s234 = sld [smem:[#allocation10 + $0x11]]
    %v235 = vstv %s234
    %v236 = vmul.f32 %v235, %v145
    %v237 = vadd.f32 %v229, %v236
    %s238 = sld [smem:[#allocation10 + $0x12]]
    %v239 = vstv %s238
    %v240 = vmul.f32 %v239, %v156
    %v241 = vadd.f32 %v233, %v240
    %s242 = sld [smem:[#allocation10 + $0x13]]
    %v243 = vstv %s242
    %v244 = vmul.f32 %v243, %v156
    %v245 = vadd.f32 %v237, %v244
    %246 = vrot.lane.b32.xlu0 %v245, 127
    %v247 = vpop.permute.xlu0 %246
    %v248 = vadd.f32 %v241, %v247
    %s249 = sld [smem:[#allocation11 + $0x1]]
    %v250 = vstv %s249
    %v251 = vadd.f32 %v248, %v250
    %v252 = vmax.f32 %v251, 0.0
    %s253 = sld [smem:[#allocation13 + $0x2]]
    %v254 = vstv %s253
    %v255 = vmul.f32 %v254, %v252
    %s256 = sld [smem:[#allocation13 + $0x3]]
    %v257 = vstv %s256
    %v258 = vmul.f32 %v257, %v252
    %v259 = vadd.f32 %v204, %v255
    %v260 = vadd.f32 %v207, %v258
    %s261 = sld [smem:[#allocation10 + $0x14]]
    %v262 = vstv %s261
    %v263 = vmul.f32 %v262, %v112
    %s264 = sld [smem:[#allocation10 + $0x15]]
    %v265 = vstv %s264
    %v266 = vmul.f32 %v265, %v112
    %s267 = sld [smem:[#allocation10 + $0x16]]
    %v268 = vstv %s267
    %v269 = vmul.f32 %v268, %v123
    %v270 = vadd.f32 %v263, %v269
    %s271 = sld [smem:[#allocation10 + $0x17]]
    %v272 = vstv %s271
    %v273 = vmul.f32 %v272, %v123
    %v274 = vadd.f32 %v266, %v273
    %s275 = sld [smem:[#allocation10 + $0x18]]
    %v276 = vstv %s275
    %v277 = vmul.f32 %v276, %v134
    %v278 = vadd.f32 %v270, %v277
    %s279 = sld [smem:[#allocation10 + $0x19]]
    %v280 = vstv %s279
    %v281 = vmul.f32 %v280, %v134
    %v282 = vadd.f32 %v274, %v281
    %s283 = sld [smem:[#allocation10 + $0x1a]]
    %v284 = vstv %s283
    %v285 = vmul.f32 %v284, %v145
    %v286 = vadd.f32 %v278, %v285
    %s287 = sld [smem:[#allocation10 + $0x1b]]
    %v288 = vstv %s287
    %v289 = vmul.f32 %v288, %v145
    %v290 = vadd.f32 %v282, %v289
    %s291 = sld [smem:[#allocation10 + $0x1c]]
    %v292 = vstv %s291
    %v293 = vmul.f32 %v292, %v156
    %v294 = vadd.f32 %v286, %v293
    %s295 = sld [smem:[#allocation10 + $0x1d]]
    %v296 = vstv %s295
    %v297 = vmul.f32 %v296, %v156
    %v298 = vadd.f32 %v290, %v297
    %299 = vrot.lane.b32.xlu0 %v298, 127
    %v300 = vpop.permute.xlu0 %299
    %v301 = vadd.f32 %v294, %v300
    %s302 = sld [smem:[#allocation11 + $0x2]]
    %v303 = vstv %s302
    %v304 = vadd.f32 %v301, %v303
    %v305 = vmax.f32 %v304, 0.0
    %s306 = sld [smem:[#allocation13 + $0x4]]
    %v307 = vstv %s306
    %v308 = vmul.f32 %v307, %v305
    %s309 = sld [smem:[#allocation13 + $0x5]]
    %v310 = vstv %s309
    %v311 = vmul.f32 %v310, %v305
    %v312 = vadd.f32 %v259, %v308
    %v313 = vadd.f32 %v260, %v311
    %s314 = sld [smem:[#allocation10 + $0x1e]]
    %v315 = vstv %s314
    %v316 = vmul.f32 %v315, %v112
    %s317 = sld [smem:[#allocation10 + $0x1f]]
    %v318 = vstv %s317
    %v319 = vmul.f32 %v318, %v112
    %s320 = sld [smem:[#allocation10 + $0x20]]
    %v321 = vstv %s320
    %v322 = vmul.f32 %v321, %v123
    %v323 = vadd.f32 %v316, %v322
    %s324 = sld [smem:[#allocation10 + $0x21]]
    %v325 = vstv %s324
    %v326 = vmul.f32 %v325, %v123
    %v327 = vadd.f32 %v319, %v326
    %s328 = sld [smem:[#allocation10 + $0x22]]
    %v329 = vstv %s328
    %v330 = vmul.f32 %v329, %v134
    %v331 = vadd.f32 %v323, %v330
    %s332 = sld [smem:[#allocation10 + $0x23]]
    %v333 = vstv %s332
    %v334 = vmul.f32 %v333, %v134
    %v335 = vadd.f32 %v327, %v334
    %s336 = sld [smem:[#allocation10 + $0x24]]
    %v337 = vstv %s336
    %v338 = vmul.f32 %v337, %v145
    %v339 = vadd.f32 %v331, %v338
    %s340 = sld [smem:[#allocation10 + $0x25]]
    %v341 = vstv %s340
    %v342 = vmul.f32 %v341, %v145
    %v343 = vadd.f32 %v335, %v342
    %s344 = sld [smem:[#allocation10 + $0x26]]
    %v345 = vstv %s344
    %v346 = vmul.f32 %v345, %v156
    %v347 = vadd.f32 %v339, %v346
    %s348 = sld [smem:[#allocation10 + $0x27]]
    %v349 = vstv %s348
    %v350 = vmul.f32 %v349, %v156
    %v351 = vadd.f32 %v343, %v350
    %352 = vrot.lane.b32.xlu0 %v351, 127
    %v353 = vpop.permute.xlu0 %352
    %v354 = vadd.f32 %v347, %v353
    %s355 = sld [smem:[#allocation11 + $0x3]]
    %v356 = vstv %s355
    %v357 = vadd.f32 %v354, %v356
    %v358 = vmax.f32 %v357, 0.0
    %s359 = sld [smem:[#allocation13 + $0x6]]
    %v360 = vstv %s359
    %v361 = vmul.f32 %v360, %v358
    %s362 = sld [smem:[#allocation13 + $0x7]]
    %v363 = vstv %s362
    %v364 = vmul.f32 %v363, %v358
    %v365 = vadd.f32 %v312, %v361
    %v366 = vadd.f32 %v313, %v364
    %s367 = sld [smem:[#allocation10 + $0x28]]
    %v368 = vstv %s367
    %v369 = vmul.f32 %v368, %v112
    %s370 = sld [smem:[#allocation10 + $0x29]]
    %v371 = vstv %s370
    %v372 = vmul.f32 %v371, %v112
    %s373 = sld [smem:[#allocation10 + $0x2a]]
    %v374 = vstv %s373
    %v375 = vmul.f32 %v374, %v123
    %v376 = vadd.f32 %v369, %v375
    %s377 = sld [smem:[#allocation10 + $0x2b]]
    %v378 = vstv %s377
    %v379 = vmul.f32 %v378, %v123
    %v380 = vadd.f32 %v372, %v379
    %s381 = sld [smem:[#allocation10 + $0x2c]]
    %v382 = vstv %s381
    %v383 = vmul.f32 %v382, %v134
    %v384 = vadd.f32 %v376, %v383
    %s385 = sld [smem:[#allocation10 + $0x2d]]
    %v386 = vstv %s385
    %v387 = vmul.f32 %v386, %v134
    %v388 = vadd.f32 %v380, %v387
    %s389 = sld [smem:[#allocation10 + $0x2e]]
    %v390 = vstv %s389
    %v391 = vmul.f32 %v390, %v145
    %v392 = vadd.f32 %v384, %v391
    %s393 = sld [smem:[#allocation10 + $0x2f]]
    %v394 = vstv %s393
    %v395 = vmul.f32 %v394, %v145
    %v396 = vadd.f32 %v388, %v395
    %s397 = sld [smem:[#allocation10 + $0x30]]
    %v398 = vstv %s397
    %v399 = vmul.f32 %v398, %v156
    %v400 = vadd.f32 %v392, %v399
    %s401 = sld [smem:[#allocation10 + $0x31]]
    %v402 = vstv %s401
    %v403 = vmul.f32 %v402, %v156
    %v404 = vadd.f32 %v396, %v403
    %405 = vrot.lane.b32.xlu0 %v404, 127
    %v406 = vpop.permute.xlu0 %405
    %v407 = vadd.f32 %v400, %v406
    %s408 = sld [smem:[#allocation11 + $0x4]]
    %v409 = vstv %s408
    %v410 = vadd.f32 %v407, %v409
    %v411 = vmax.f32 %v410, 0.0
    %s412 = sld [smem:[#allocation13 + $0x8]]
    %v413 = vstv %s412
    %v414 = vmul.f32 %v413, %v411
    %s415 = sld [smem:[#allocation13 + $0x9]]
    %v416 = vstv %s415
    %v417 = vmul.f32 %v416, %v411
    %v418 = vadd.f32 %v365, %v414
    %v419 = vadd.f32 %v366, %v417
    %s420 = sld [smem:[#allocation10 + $0x32]]
    %v421 = vstv %s420
    %v422 = vmul.f32 %v421, %v112
    %s423 = sld [smem:[#allocation10 + $0x33]]
    %v424 = vstv %s423
    %v425 = vmul.f32 %v424, %v112
    %s426 = sld [smem:[#allocation10 + $0x34]]
    %v427 = vstv %s426
    %v428 = vmul.f32 %v427, %v123
    %v429 = vadd.f32 %v422, %v428
    %s430 = sld [smem:[#allocation10 + $0x35]]
    %v431 = vstv %s430
    %v432 = vmul.f32 %v431, %v123
    %v433 = vadd.f32 %v425, %v432
    %s434 = sld [smem:[#allocation10 + $0x36]]
    %v435 = vstv %s434
    %v436 = vmul.f32 %v435, %v134
    %v437 = vadd.f32 %v429, %v436
    %s438 = sld [smem:[#allocation10 + $0x37]]
    %v439 = vstv %s438
    %v440 = vmul.f32 %v439, %v134
    %v441 = vadd.f32 %v433, %v440
    %s442 = sld [smem:[#allocation10 + $0x38]]
    %v443 = vstv %s442
    %v444 = vmul.f32 %v443, %v145
    %v445 = vadd.f32 %v437, %v444
    %s446 = sld [smem:[#allocation10 + $0x39]]
    %v447 = vstv %s446
    %v448 = vmul.f32 %v447, %v145
    %v449 = vadd.f32 %v441, %v448
    %s450 = sld [smem:[#allocation10 + $0x3a]]
    %v451 = vstv %s450
    %v452 = vmul.f32 %v451, %v156
    %v453 = vadd.f32 %v445, %v452
    %s454 = sld [smem:[#allocation10 + $0x3b]]
    %v455 = vstv %s454
    %v456 = vmul.f32 %v455, %v156
    %v457 = vadd.f32 %v449, %v456
    %458 = vrot.lane.b32.xlu0 %v457, 127
    %v459 = vpop.permute.xlu0 %458
    %v460 = vadd.f32 %v453, %v459
    %s461 = sld [smem:[#allocation11 + $0x5]]
    %v462 = vstv %s461
    %v463 = vadd.f32 %v460, %v462
    %v464 = vmax.f32 %v463, 0.0
    %s465 = sld [smem:[#allocation13 + $0xa]]
    %v466 = vstv %s465
    %v467 = vmul.f32 %v466, %v464
    %s468 = sld [smem:[#allocation13 + $0xb]]
    %v469 = vstv %s468
    %v470 = vmul.f32 %v469, %v464
    %v471 = vadd.f32 %v418, %v467
    %v472 = vadd.f32 %v419, %v470
    %s473 = sld [smem:[#allocation10 + $0x3c]]
    %v474 = vstv %s473
    %v475 = vmul.f32 %v474, %v112
    %s476 = sld [smem:[#allocation10 + $0x3d]]
    %v477 = vstv %s476
    %v478 = vmul.f32 %v477, %v112
    %s479 = sld [smem:[#allocation10 + $0x3e]]
    %v480 = vstv %s479
    %v481 = vmul.f32 %v480, %v123
    %v482 = vadd.f32 %v475, %v481
    %s483 = sld [smem:[#allocation10 + $0x3f]]
    %v484 = vstv %s483
    %v485 = vmul.f32 %v484, %v123
    %v486 = vadd.f32 %v478, %v485
    %s487 = sld [smem:[#allocation10 + $0x40]]
    %v488 = vstv %s487
    %v489 = vmul.f32 %v488, %v134
    %v490 = vadd.f32 %v482, %v489
    %s491 = sld [smem:[#allocation10 + $0x41]]
    %v492 = vstv %s491
    %v493 = vmul.f32 %v492, %v134
    %v494 = vadd.f32 %v486, %v493
    %s495 = sld [smem:[#allocation10 + $0x42]]
    %v496 = vstv %s495
    %v497 = vmul.f32 %v496, %v145
    %v498 = vadd.f32 %v490, %v497
    %s499 = sld [smem:[#allocation10 + $0x43]]
    %v500 = vstv %s499
    %v501 = vmul.f32 %v500, %v145
    %v502 = vadd.f32 %v494, %v501
    %s503 = sld [smem:[#allocation10 + $0x44]]
    %v504 = vstv %s503
    %v505 = vmul.f32 %v504, %v156
    %v506 = vadd.f32 %v498, %v505
    %s507 = sld [smem:[#allocation10 + $0x45]]
    %v508 = vstv %s507
    %v509 = vmul.f32 %v508, %v156
    %v510 = vadd.f32 %v502, %v509
    %511 = vrot.lane.b32.xlu0 %v510, 127
    %v512 = vpop.permute.xlu0 %511
    %v513 = vadd.f32 %v506, %v512
    %s514 = sld [smem:[#allocation11 + $0x6]]
    %v515 = vstv %s514
    %v516 = vadd.f32 %v513, %v515
    %v517 = vmax.f32 %v516, 0.0
    %s518 = sld [smem:[#allocation13 + $0xc]]
    %v519 = vstv %s518
    %v520 = vmul.f32 %v519, %v517
    %s521 = sld [smem:[#allocation13 + $0xd]]
    %v522 = vstv %s521
    %v523 = vmul.f32 %v522, %v517
    %v524 = vadd.f32 %v471, %v520
    %v525 = vadd.f32 %v472, %v523
    %s526 = sld [smem:[#allocation10 + $0x46]]
    %v527 = vstv %s526
    %v528 = vmul.f32 %v527, %v112
    %s529 = sld [smem:[#allocation10 + $0x47]]
    %v530 = vstv %s529
    %v531 = vmul.f32 %v530, %v112
    %s532 = sld [smem:[#allocation10 + $0x48]]
    %v533 = vstv %s532
    %v534 = vmul.f32 %v533, %v123
    %v535 = vadd.f32 %v528, %v534
    %s536 = sld [smem:[#allocation10 + $0x49]]
    %v537 = vstv %s536
    %v538 = vmul.f32 %v537, %v123
    %v539 = vadd.f32 %v531, %v538
    %s540 = sld [smem:[#allocation10 + $0x4a]]
    %v541 = vstv %s540
    %v542 = vmul.f32 %v541, %v134
    %v543 = vadd.f32 %v535, %v542
    %s544 = sld [smem:[#allocation10 + $0x4b]]
    %v545 = vstv %s544
    %v546 = vmul.f32 %v545, %v134
    %v547 = vadd.f32 %v539, %v546
    %s548 = sld [smem:[#allocation10 + $0x4c]]
    %v549 = vstv %s548
    %v550 = vmul.f32 %v549, %v145
    %v551 = vadd.f32 %v543, %v550
    %s552 = sld [smem:[#allocation10 + $0x4d]]
    %v553 = vstv %s552
    %v554 = vmul.f32 %v553, %v145
    %v555 = vadd.f32 %v547, %v554
    %s556 = sld [smem:[#allocation10 + $0x4e]]
    %v557 = vstv %s556
    %v558 = vmul.f32 %v557, %v156
    %v559 = vadd.f32 %v551, %v558
    %s560 = sld [smem:[#allocation10 + $0x4f]]
    %v561 = vstv %s560
    %v562 = vmul.f32 %v561, %v156
    %v563 = vadd.f32 %v555, %v562
    %564 = vrot.lane.b32.xlu0 %v563, 127
    %v565 = vpop.permute.xlu0 %564
    %v566 = vadd.f32 %v559, %v565
    %s567 = sld [smem:[#allocation11 + $0x7]]
    %v568 = vstv %s567
    %v569 = vadd.f32 %v566, %v568
    %v570 = vmax.f32 %v569, 0.0
    %s571 = sld [smem:[#allocation13 + $0xe]]
    %v572 = vstv %s571
    %v573 = vmul.f32 %v572, %v570
    %s574 = sld [smem:[#allocation13 + $0xf]]
    %v575 = vstv %s574
    %v576 = vmul.f32 %v575, %v570
    %v577 = vadd.f32 %v524, %v573
    %v578 = vadd.f32 %v525, %v576
    %s579 = sld [smem:[#allocation10 + $0x50]]
    %v580 = vstv %s579
    %v581 = vmul.f32 %v580, %v112
    %s582 = sld [smem:[#allocation10 + $0x51]]
    %v583 = vstv %s582
    %v584 = vmul.f32 %v583, %v112
    %s585 = sld [smem:[#allocation10 + $0x52]]
    %v586 = vstv %s585
    %v587 = vmul.f32 %v586, %v123
    %v588 = vadd.f32 %v581, %v587
    %s589 = sld [smem:[#allocation10 + $0x53]]
    %v590 = vstv %s589
    %v591 = vmul.f32 %v590, %v123
    %v592 = vadd.f32 %v584, %v591
    %s593 = sld [smem:[#allocation10 + $0x54]]
    %v594 = vstv %s593
    %v595 = vmul.f32 %v594, %v134
    %v596 = vadd.f32 %v588, %v595
    %s597 = sld [smem:[#allocation10 + $0x55]]
    %v598 = vstv %s597
    %v599 = vmul.f32 %v598, %v134
    %v600 = vadd.f32 %v592, %v599
    %s601 = sld [smem:[#allocation10 + $0x56]]
    %v602 = vstv %s601
    %v603 = vmul.f32 %v602, %v145
    %v604 = vadd.f32 %v596, %v603
    %s605 = sld [smem:[#allocation10 + $0x57]]
    %v606 = vstv %s605
    %v607 = vmul.f32 %v606, %v145
    %v608 = vadd.f32 %v600, %v607
    %s609 = sld [smem:[#allocation10 + $0x58]]
    %v610 = vstv %s609
    %v611 = vmul.f32 %v610, %v156
    %v612 = vadd.f32 %v604, %v611
    %s613 = sld [smem:[#allocation10 + $0x59]]
    %v614 = vstv %s613
    %v615 = vmul.f32 %v614, %v156
    %v616 = vadd.f32 %v608, %v615
    %617 = vrot.lane.b32.xlu0 %v616, 127
    %v618 = vpop.permute.xlu0 %617
    %v619 = vadd.f32 %v612, %v618
    %s620 = sld [smem:[#allocation11 + $0x8]]
    %v621 = vstv %s620
    %v622 = vadd.f32 %v619, %v621
    %v623 = vmax.f32 %v622, 0.0
    %s624 = sld [smem:[#allocation13 + $0x10]]
    %v625 = vstv %s624
    %v626 = vmul.f32 %v625, %v623
    %s627 = sld [smem:[#allocation13 + $0x11]]
    %v628 = vstv %s627
    %v629 = vmul.f32 %v628, %v623
    %v630 = vadd.f32 %v577, %v626
    %v631 = vadd.f32 %v578, %v629
    %s632 = sld [smem:[#allocation10 + $0x5a]]
    %v633 = vstv %s632
    %v634 = vmul.f32 %v633, %v112
    %s635 = sld [smem:[#allocation10 + $0x5b]]
    %v636 = vstv %s635
    %v637 = vmul.f32 %v636, %v112
    %s638 = sld [smem:[#allocation10 + $0x5c]]
    %v639 = vstv %s638
    %v640 = vmul.f32 %v639, %v123
    %v641 = vadd.f32 %v634, %v640
    %s642 = sld [smem:[#allocation10 + $0x5d]]
    %v643 = vstv %s642
    %v644 = vmul.f32 %v643, %v123
    %v645 = vadd.f32 %v637, %v644
    %s646 = sld [smem:[#allocation10 + $0x5e]]
    %v647 = vstv %s646
    %v648 = vmul.f32 %v647, %v134
    %v649 = vadd.f32 %v641, %v648
    %s650 = sld [smem:[#allocation10 + $0x5f]]
    %v651 = vstv %s650
    %v652 = vmul.f32 %v651, %v134
    %v653 = vadd.f32 %v645, %v652
    %s654 = sld [smem:[#allocation10 + $0x60]]
    %v655 = vstv %s654
    %v656 = vmul.f32 %v655, %v145
    %v657 = vadd.f32 %v649, %v656
    %s658 = sld [smem:[#allocation10 + $0x61]]
    %v659 = vstv %s658
    %v660 = vmul.f32 %v659, %v145
    %v661 = vadd.f32 %v653, %v660
    %s662 = sld [smem:[#allocation10 + $0x62]]
    %v663 = vstv %s662
    %v664 = vmul.f32 %v663, %v156
    %v665 = vadd.f32 %v657, %v664
    %s666 = sld [smem:[#allocation10 + $0x63]]
    %v667 = vstv %s666
    %v668 = vmul.f32 %v667, %v156
    %v669 = vadd.f32 %v661, %v668
    %670 = vrot.lane.b32.xlu0 %v669, 127
    %v671 = vpop.permute.xlu0 %670
    %v672 = vadd.f32 %v665, %v671
    %s673 = sld [smem:[#allocation11 + $0x9]]
    %v674 = vstv %s673
    %v675 = vadd.f32 %v672, %v674
    %v676 = vmax.f32 %v675, 0.0
    %s677 = sld [smem:[#allocation13 + $0x12]]
    %v678 = vstv %s677
    %v679 = vmul.f32 %v678, %v676
    %s680 = sld [smem:[#allocation13 + $0x13]]
    %v681 = vstv %s680
    %v682 = vmul.f32 %v681, %v676
    %v683 = vadd.f32 %v630, %v679
    %v684 = vadd.f32 %v631, %v682
    %685 = vrot.lane.b32.xlu0 %v684, 127
    %v686 = vpop.permute.xlu0 %685
    %v687 = vadd.f32 %v683, %v686
    %s688 = sld [smem:[#allocation2]]
    %v689 = vstv %s688
    %v690 = vadd.f32 %v687, %v689
    %v691 = vround.ne.pseudo %v690
    %692 = vst [vmem:[#allocation14] sm:$0xff] %v691
    // Predicated region
    $region54: #{tpu_custom_call.1} parent=1 // pred_check
      _
    $region55: #{tpu_custom_call.1} parent=1 // pred_check_branch
      %694 = sbr.rel (0) target = $region57
    $region56: #{tpu_custom_call.1} parent=1 // pred_region
      %s696 = ssub.s32 128, 128
      %697 = vsyncadd [#allocation5], %s696
      %s699 = sshll.u32 [#allocation14], 4
      %s700 = int_to_ptr.vmem [resolvable:$true] %s699
      %702 = dma.vmem_to_hbm [thread:$0]  %s700, 128, %s7, [#allocation5]
    $region57: #{tpu_custom_call.1} parent=1 // pred_fallthru
      _
    // Predicated region
    $region58: #{tpu_custom_call.1} parent=1 // pred_check
      _
    $region59: #{tpu_custom_call.1} parent=1 // pred_check_branch
      %704 = sbr.rel (0) target = $region61
    $region60: #{tpu_custom_call.1} parent=1 // pred_region
      %705 = dma.done [#allocation5], 128
    $region61: #{tpu_custom_call.1} parent=1 // pred_fallthru
      _
    %706 = vsyncpa [#allocation4], 1
    %707 = vsyncpa [#allocation5], 1
    %708 = vsyncpa [#allocation6], 1
    %709 = vsyncpa [#allocation9], 1
    %710 = vsyncpa [#allocation12], 1

</llo_original>
